<compile_context>
chip_gen: v7x
topology: tpu7x:2x2x1
jax: 0.10.0
libtpu: 0.0.40
codegen_flags: <defaults>
</compile_context>

<pallas_src>
import functools

import jax
import jax.numpy as jnp
from jax.experimental import pallas as pl
from jax.experimental.pallas import tpu as pltpu

BN_EPS = 1e-5
LEAKY_SLOPE = 0.1


def _leaky(z):
    return jnp.where(z >= 0, z, LEAKY_SLOPE * z)


def _vmem_limit_bytes():
    """Generation-dependent scoped-VMEM limit: ~3/4 of physical per-core VMEM.

    v5e/v6e (128 MiB) -> 96 MiB, v7x (64 MiB/TC) -> 48 MiB.  Falls back to the
    v7x-safe value when hardware info is unavailable (e.g. interpret mode).
    """
    try:
        cap = int(pltpu.get_tpu_info().vmem_capacity_bytes)
    except Exception:
        cap = 64 * 1024 * 1024
    return min((cap * 3) // 4, 100 * 1024 * 1024)


def _pick_tile_s(S, tile_s, Cin, Cout, in_bytes, out_bytes, vmem_budget):
    """Spatial (lane) tile: full extent if it fits, else a multiple of 128
    chosen so the double-buffered per-step tiles stay within the VMEM budget
    (v7x-aware: the budget is derived from the per-core physical VMEM)."""
    if S <= tile_s:
        return S
    ts = max(128, (int(tile_s) // 128) * 128)

    def step_bytes(t):  # 2 activation inputs + 1 output tile, double-buffered
        return 2 * t * (2 * Cin * in_bytes + Cout * out_bytes)

    while ts > 128 and step_bytes(ts) > vmem_budget:
        ts -= 128
    return ts


# ---- pass 1: per-channel sum / sum^2 of conv1_1(x_sub) and conv2_1(pooled) --
def _stats1_kernel(xs_ref, xp_ref, w1_ref, w3_ref, out_ref):
    # xs_ref/xp_ref: (Cin, ts); w1_ref/w3_ref: (Cout, Cin); out_ref: (Cout, 4)
    @pl.when(pl.program_id(1) == 0)
    def _():
        out_ref[...] = jnp.zeros_like(out_ref)

    z1 = jnp.dot(w1_ref[...], xs_ref[...], preferred_element_type=jnp.float32)
    z3 = jnp.dot(w3_ref[...], xp_ref[...], preferred_element_type=jnp.float32)
    # Padded spatial lanes are exact zeros -> they contribute 0 here.
    s1 = jnp.sum(z1, axis=1, keepdims=True)
    q1 = jnp.sum(z1 * z1, axis=1, keepdims=True)
    s3 = jnp.sum(z3, axis=1, keepdims=True)
    q3 = jnp.sum(z3 * z3, axis=1, keepdims=True)
    out_ref[...] += jnp.concatenate([s1, q1, s3, q3], axis=1)


# ---- pass 2: per-channel sum / sum^2 of conv1_2(leaky(bn1(conv1_1(x)))) -----
def _stats2_kernel(xs_ref, w1_ref, w2_ref, ss1_ref, out_ref, *,
                   tile_s, s_valid_last):
    @pl.when(pl.program_id(1) == 0)
    def _():
        out_ref[...] = jnp.zeros_like(out_ref)

    z1 = jnp.dot(w1_ref[...], xs_ref[...], preferred_element_type=jnp.float32)
    ss = ss1_ref[...]                       # (Cout, 2): [:,0]=scale1 [:,1]=shift1
    h = _leaky(z1 * ss[:, 0:1] + ss[:, 1:2])
    z2 = jnp.dot(w2_ref[...], h.astype(w2_ref.dtype),
                 preferred_element_type=jnp.float32)
    if s_valid_last != tile_s:
        # Padded lanes give h = leaky(shift1) != 0; exclude them.  Only emitted
        # when padding exists, and only active on the last spatial tile.
        limit = jnp.where(pl.program_id(1) == pl.num_programs(1) - 1,
                          s_valid_last, tile_s)
        lane = jax.lax.broadcasted_iota(jnp.int32, z2.shape, 1)
        z2 = jnp.where(lane < limit, z2, 0.0)
    s2 = jnp.sum(z2, axis=1, keepdims=True)
    q2 = jnp.sum(z2 * z2, axis=1, keepdims=True)
    out_ref[...] += jnp.concatenate([s2, q2], axis=1)


# ---- pass 3: apply both branches and fuse -----------------------------------
def _apply_kernel(xs_ref, xp_ref, w1_ref, w2_ref, w3_ref, ss_ref, out_ref):
    ss = ss_ref[...]        # (Cout, 6): sc1, sh1, sc2, sh2, sc3, sh3
    # branch x: conv1_1 -> BN -> leaky -> conv1_2 -> BN -> leaky
    z1 = jnp.dot(w1_ref[...], xs_ref[...], preferred_element_type=jnp.float32)
    h = _leaky(z1 * ss[:, 0:1] + ss[:, 1:2])
    z2 = jnp.dot(w2_ref[...], h.astype(w2_ref.dtype),
                 preferred_element_type=jnp.float32)
    a = _leaky(z2 * ss[:, 2:3] + ss[:, 3:4])
    # branch y: AvgPool2d(2) (host-built slab) -> conv2_1 -> BN -> leaky
    z3 = jnp.dot(w3_ref[...], xp_ref[...], preferred_element_type=jnp.float32)
    b = _leaky(z3 * ss[:, 4:5] + ss[:, 5:6])
    out_ref[...] = (a + b).astype(out_ref.dtype)


@functools.partial(jax.jit,
                   static_argnames=("tile_s", "compute_dtype", "out_dtype"))
def downsampling_block(x, params, tile_s=2048, compute_dtype=jnp.bfloat16,
                       out_dtype=jnp.float32):
    """x: (N, Cin, H, W) NCHW like PyTorch. Returns (N, Cout, H//2, W//2)."""
    w1, b1, w2, b2, w3, b3, gamma, beta = params
    del b1, b2, b3  # exactly cancelled by training-mode BN's mean subtraction

    N, Cin, H, W = x.shape
    Cout = w1.shape[0]
    H2, W2 = H // 2, W // 2
    S = H2 * W2                 # per-image output spatial size (lane axis)
    M = N * S                   # BN reduction count

    # ---- channel-major host prep: no NCHW<->NHWC transposes -----------------
    xr = x.reshape(N, Cin, H2, 2, W2, 2)
    x_sub = xr[:, :, :, 0, :, 0].reshape(N, Cin, S)     # == x[:, :, ::2, ::2]
    pooled = jnp.mean(xr, axis=(3, 5)).reshape(N, Cin, S)

    vmem_limit = _vmem_limit_bytes()
    ts = _pick_tile_s(S, int(tile_s), Cin, Cout,
                      jnp.dtype(compute_dtype).itemsize,
                      jnp.dtype(out_dtype).itemsize,
                      vmem_limit // 2)
    n_s = -(-S // ts)
    S_pad = n_s * ts
    s_last = S - (n_s - 1) * ts          # valid lanes on the last spatial tile
    if S_pad != S:
        pad = ((0, 0), (0, 0), (0, S_pad - S))
        x_sub = jnp.pad(x_sub, pad)
        pooled = jnp.pad(pooled, pad)
    x_sub = x_sub.astype(compute_dtype)
    pooled = pooled.astype(compute_dtype)

    w1c = w1.astype(compute_dtype)       # (Cout, Cin)
    w2c = w2.astype(compute_dtype)       # (Cout, Cout)
    w3c = w3.astype(compute_dtype)       # (Cout, Cin)
    gamma_f = gamma.reshape(-1).astype(jnp.float32)
    beta_f = beta.reshape(-1).astype(jnp.float32)

    act_spec = pl.BlockSpec((None, Cin, ts), lambda n, s: (n, 0, s))
    w13_spec = pl.BlockSpec((Cout, Cin), lambda n, s: (0, 0))
    w2_spec = pl.BlockSpec((Cout, Cout), lambda n, s: (0, 0))

    stats_cparams = pltpu.CompilerParams(
        dimension_semantics=("parallel", "arbitrary"),   # accumulate over s
        vmem_limit_bytes=vmem_limit)
    apply_cparams = pltpu.CompilerParams(
        dimension_semantics=("parallel", "parallel"),
        vmem_limit_bytes=vmem_limit)

    def bn_scale_shift(s_sum, q_sum):
        # Single-pass E[x^2]-E[x]^2 variance; fine for typical activation
        # magnitudes (guarded by the max with 0).
        mean = s_sum / M
        var = jnp.maximum(q_sum / M - mean * mean, 0.0)
        scale = gamma_f * jax.lax.rsqrt(var + BN_EPS)
        shift = beta_f - mean * scale
        return scale, shift

    # ---- pass 1: statistics for BN after conv1_1 and after conv2_1 ----------
    part1 = pl.pallas_call(
        _stats1_kernel,
        grid=(N, n_s),
        in_specs=[act_spec, act_spec, w13_spec, w13_spec],
        out_specs=pl.BlockSpec((None, Cout, 4), lambda n, s: (n, 0, 0)),
        out_shape=jax.ShapeDtypeStruct((N, Cout, 4), jnp.float32),
        compiler_params=stats_cparams,
    )(x_sub, pooled, w1c, w3c)
    t1 = jnp.sum(part1, axis=0)                              # (Cout, 4), tiny
    sc1, sh1 = bn_scale_shift(t1[:, 0], t1[:, 1])
    sc3, sh3 = bn_scale_shift(t1[:, 2], t1[:, 3])

    # ---- pass 2: statistics for BN after conv1_2 (needs BN1's scale/shift) --
    ss1 = jnp.stack([sc1, sh1], axis=1)                      # (Cout, 2) f32
    part2 = pl.pallas_call(
        functools.partial(_stats2_kernel, tile_s=ts, s_valid_last=s_last),
        grid=(N, n_s),
        in_specs=[act_spec, w13_spec, w2_spec,
                  pl.BlockSpec((Cout, 2), lambda n, s: (0, 0))],
        out_specs=pl.BlockSpec((None, Cout, 2), lambda n, s: (n, 0, 0)),
        out_shape=jax.ShapeDtypeStruct((N, Cout, 2), jnp.float32),
        compiler_params=stats_cparams,
    )(x_sub, w1c, w2c, ss1)
    t2 = jnp.sum(part2, axis=0)                              # (Cout, 2)
    sc2, sh2 = bn_scale_shift(t2[:, 0], t2[:, 1])

    # ---- pass 3: fused apply (lane-dense spatial output) ---------------------
    ss_all = jnp.stack([sc1, sh1, sc2, sh2, sc3, sh3], axis=1)   # (Cout, 6)
    out_slab = pl.pallas_call(
        _apply_kernel,
        grid=(N, n_s),
        in_specs=[act_spec, act_spec, w13_spec, w2_spec, w13_spec,
                  pl.BlockSpec((Cout, 6), lambda n, s: (0, 0))],
        out_specs=pl.BlockSpec((None, Cout, ts), lambda n, s: (n, 0, s)),
        out_shape=jax.ShapeDtypeStruct((N, Cout, S_pad), out_dtype),
        compiler_params=apply_cparams,
    )(x_sub, pooled, w1c, w2c, w3c, ss_all)

    # Padded spatial lanes (if any) hold garbage and are dropped here; the
    # reshape back to NCHW needs no transpose in channel-major layout.
    return out_slab[:, :, :S].reshape(N, Cout, H2, W2)


def init_params(key, in_channels, out_channels):
    """Synthetic params matching nn.Conv2d(1x1, bias=True) / nn.BatchNorm2d.

    Conv weights use PyTorch's (Cout, Cin) layout (kernel-size-1 squeezed)."""
    k = jax.random.split(key, 8)
    w1 = jax.random.normal(k[0], (out_channels, in_channels), jnp.float32) * 0.1
    b1 = jax.random.normal(k[1], (out_channels,), jnp.float32) * 0.1
    w2 = jax.random.normal(k[2], (out_channels, out_channels), jnp.float32) * 0.1
    b2 = jax.random.normal(k[3], (out_channels,), jnp.float32) * 0.1
    w3 = jax.random.normal(k[4], (out_channels, in_channels), jnp.float32) * 0.1
    b3 = jax.random.normal(k[5], (out_channels,), jnp.float32) * 0.1
    gamma = 1.0 + 0.1 * jax.random.normal(k[6], (out_channels,), jnp.float32)
    beta = 0.1 * jax.random.normal(k[7], (out_channels,), jnp.float32)
    return (w1, b1, w2, b2, w3, b3, gamma, beta)


def _reference(x, params, compute_dtype=jnp.float32):
    """Pure-JAX reference of the PyTorch forward (one shared BatchNorm2d applied
    three times in training mode, conv biases included).  Matmul operands are
    rounded to `compute_dtype` like the kernel path, but the dot itself runs in
    f32 at HIGHEST precision (avoids eager bf16-dot paths some backends lack)."""
    w1, b1, w2, b2, w3, b3, gamma, beta = params

    def q(v):
        return v.astype(compute_dtype).astype(jnp.float32)

    def conv1x1(z, w, b, stride=1):          # z: NCHW, w: (Cout, Cin)
        zs = z[:, :, ::stride, ::stride] if stride > 1 else z
        out = jnp.einsum('nchw,dc->ndhw', q(zs), q(w),
                         precision=jax.lax.Precision.HIGHEST)
        return out + b.reshape(1, -1, 1, 1)

    def bn(z):
        mu = jnp.mean(z, axis=(0, 2, 3), keepdims=True)
        var = jnp.mean((z - mu) ** 2, axis=(0, 2, 3), keepdims=True)
        zh = (z - mu) / jnp.sqrt(var + BN_EPS)
        return zh * gamma.reshape(1, -1, 1, 1) + beta.reshape(1, -1, 1, 1)

    a = _leaky(bn(conv1x1(x, w1, b1, stride=2)))
    a = _leaky(bn(conv1x1(a, w2, b2)))
    N, C, H, W = x.shape
    y = x.reshape(N, C, H // 2, 2, W // 2, 2).mean(axis=(3, 5))
    y = _leaky(bn(conv1x1(y, w3, b3)))
    return a + y


if __name__ == "__main__":
    key = jax.random.PRNGKey(0)
    kx, kp = jax.random.split(key)

    N, Cin, Cout, H, W = 2, 4, 8, 16, 16
    x = jax.random.normal(kx, (N, Cin, H, W), jnp.float32)
    params = init_params(kp, Cin, Cout)

    # 1) f32 compute path.  Loose-ish tolerance: on real hardware the MXU may
    #    run f32 matmuls at default (reduced) precision, unlike the HIGHEST-
    #    precision reference; in interpret mode both are exact.
    out = jax.block_until_ready(
        downsampling_block(x, params, compute_dtype=jnp.float32))
    assert out.shape == (N, Cout, H // 2, W // 2), out.shape
    ref = _reference(x, params, compute_dtype=jnp.float32)
    err = float(jnp.max(jnp.abs(out - ref)))
    assert err < 1e-1, err

    # 2) bf16 matmul-operand path (production config).  The reference applies
    #    the same operand rounding, so this comparison is tight and backend-
    #    independent (exact bf16 products, f32 accumulation on both sides).
    out_bf = jax.block_until_ready(downsampling_block(x, params))
    ref_bf = _reference(x, params, compute_dtype=jnp.bfloat16)
    err_bf = float(jnp.max(jnp.abs(out_bf - ref_bf)))
    assert err_bf < 2e-2, err_bf

    # 3) Multi-tile + padded-lane path: S = 400 -> 4 spatial tiles of 128 lanes
    #    (112 padded lanes on the last tile), exercising the in-kernel stats
    #    accumulation and the gated tail masking; plus the bf16 output path.
    x2 = jax.random.normal(jax.random.PRNGKey(1), (N, Cin, 40, 40), jnp.float32)
    out2 = jax.block_until_ready(
        downsampling_block(x2, params, tile_s=128, compute_dtype=jnp.float32))
    assert out2.shape == (N, Cout, 20, 20), out2.shape
    ref2 = _reference(x2, params, compute_dtype=jnp.float32)
    err2 = float(jnp.max(jnp.abs(out2 - ref2)))
    assert err2 < 1e-1, err2

    out2_bf = jax.block_until_ready(
        downsampling_block(x2, params, tile_s=128, out_dtype=jnp.bfloat16))
    assert out2_bf.dtype == jnp.bfloat16
    ref2_bf = _reference(x2, params, compute_dtype=jnp.bfloat16)
    err3 = float(jnp.max(jnp.abs(out2_bf.astype(jnp.float32) - ref2_bf)))
    assert err3 < 2e-1, err3   # includes bf16 output rounding on O(1) values

    print("KERNEL_OK")
</pallas_src>

<mosaic_0001>
module attributes {stable_mosaic.version = 11 : i64} {
  func.func @_stats1_kernel(%arg0: i32, %arg1: i32, %arg2: memref<1x4x64xf32, #tpu.memory_space<vmem>>, %arg3: memref<1x4x64xf32, #tpu.memory_space<vmem>>, %arg4: memref<8x4xf32, #tpu.memory_space<vmem>>, %arg5: memref<8x4xf32, #tpu.memory_space<vmem>>, %arg6: memref<1x8x4xf32, #tpu.memory_space<vmem>>) attributes {dimension_semantics = [#tpu.dimension_semantics<parallel>, #tpu.dimension_semantics<arbitrary>], iteration_bounds = array<i64: 2, 1>, scalar_prefetch = 0 : i64, scratch_operands = 0 : i64, tpu.core_type = #tpu.core_type<tc>, window_params = [{transform_indices = @transform_0, window_bounds = array<i64: 1, 4, 64>}, {transform_indices = @transform_1, window_bounds = array<i64: 1, 4, 64>}, {pipeline_mode = #tpu.pipeline_mode<synchronous>, transform_indices = @transform_2, window_bounds = array<i64: 8, 4>}, {pipeline_mode = #tpu.pipeline_mode<synchronous>, transform_indices = @transform_3, window_bounds = array<i64: 8, 4>}, {transform_indices = @transform_4, window_bounds = array<i64: 1, 8, 4>}]} {
    %c0_i32 = arith.constant 0 : i32
    %0 = arith.cmpi eq, %arg1, %c0_i32 : i32
    %1 = arith.extui %0 : i1 to i32
    %c0_i32_0 = arith.constant 0 : i32
    %2 = arith.cmpi ne, %1, %c0_i32_0 : i32
    scf.if %2 {
      %cst_21 = arith.constant 0.000000e+00 : f32
      %28 = vector.broadcast %cst_21 : f32 to vector<8x4xf32>
      %c0_22 = arith.constant 0 : index
      %c0_23 = arith.constant 0 : index
      %c0_24 = arith.constant 0 : index
      %29 = vector.load %arg6[%c0_22, %c0_23, %c0_24] : memref<1x8x4xf32, #tpu.memory_space<vmem>>, vector<1x8x4xf32>
      %30 = vector.shape_cast %29 : vector<1x8x4xf32> to vector<8x4xf32>
      %31 = vector.shape_cast %28 : vector<8x4xf32> to vector<1x8x4xf32>
      tpu.vector_store %arg6[%c0_22, %c0_23, %c0_24], %31 {strides = array<i32>} : memref<1x8x4xf32, #tpu.memory_space<vmem>>, vector<1x8x4xf32>,
    } else {
    }
    %c0 = arith.constant 0 : index
    %c0_1 = arith.constant 0 : index
    %3 = vector.load %arg4[%c0, %c0_1] : memref<8x4xf32, #tpu.memory_space<vmem>>, vector<8x4xf32>
    %c0_2 = arith.constant 0 : index
    %c0_3 = arith.constant 0 : index
    %c0_4 = arith.constant 0 : index
    %4 = vector.load %arg2[%c0_2, %c0_3, %c0_4] : memref<1x4x64xf32, #tpu.memory_space<vmem>>, vector<1x4x64xf32>
    %5 = vector.shape_cast %4 : vector<1x4x64xf32> to vector<4x64xf32>
    %cst = arith.constant dense<0.000000e+00> : vector<8x64xf32>
    %6 = tpu.matmul %3, %5, %cst {dimension_numbers = #tpu.dot_dimension_numbers<[1], [0], [0], [1], [0, 0, 1, 1], [], []>} : vector<8x4xf32>, vector<4x64xf32>, vector<8x64xf32> -> vector<8x64xf32>
    %c0_5 = arith.constant 0 : index
    %c0_6 = arith.constant 0 : index
    %7 = vector.load %arg5[%c0_5, %c0_6] : memref<8x4xf32, #tpu.memory_space<vmem>>, vector<8x4xf32>
    %c0_7 = arith.constant 0 : index
    %c0_8 = arith.constant 0 : index
    %c0_9 = arith.constant 0 : index
    %8 = vector.load %arg3[%c0_7, %c0_8, %c0_9] : memref<1x4x64xf32, #tpu.memory_space<vmem>>, vector<1x4x64xf32>
    %9 = vector.shape_cast %8 : vector<1x4x64xf32> to vector<4x64xf32>
    %cst_10 = arith.constant dense<0.000000e+00> : vector<8x64xf32>
    %10 = tpu.matmul %7, %9, %cst_10 {dimension_numbers = #tpu.dot_dimension_numbers<[1], [0], [0], [1], [0, 0, 1, 1], [], []>} : vector<8x4xf32>, vector<4x64xf32>, vector<8x64xf32> -> vector<8x64xf32>
    %cst_11 = arith.constant dense<0.000000e+00> : vector<8xf32>
    %11 = vector.multi_reduction <add>, %6, %cst_11 [1] : vector<8x64xf32> to vector<8xf32>
    %12 = vector.shape_cast %11 : vector<8xf32> to vector<8x1xf32>
    %13 = arith.mulf %6, %6 : vector<8x64xf32>
    %cst_12 = arith.constant dense<0.000000e+00> : vector<8xf32>
    %14 = vector.multi_reduction <add>, %13, %cst_12 [1] : vector<8x64xf32> to vector<8xf32>
    %15 = vector.shape_cast %14 : vector<8xf32> to vector<8x1xf32>
    %cst_13 = arith.constant dense<0.000000e+00> : vector<8xf32>
    %16 = vector.multi_reduction <add>, %10, %cst_13 [1] : vector<8x64xf32> to vector<8xf32>
    %17 = vector.shape_cast %16 : vector<8xf32> to vector<8x1xf32>
    %18 = arith.mulf %10, %10 : vector<8x64xf32>
    %cst_14 = arith.constant dense<0.000000e+00> : vector<8xf32>
    %19 = vector.multi_reduction <add>, %18, %cst_14 [1] : vector<8x64xf32> to vector<8xf32>
    %20 = vector.shape_cast %19 : vector<8xf32> to vector<8x1xf32>
    %c0_15 = arith.constant 0 : index
    %c0_16 = arith.constant 0 : index
    %c0_17 = arith.constant 0 : index
    %21 = vector.load %arg6[%c0_15, %c0_16, %c0_17] : memref<1x8x4xf32, #tpu.memory_space<vmem>>, vector<1x8x4xf32>
    %22 = vector.shape_cast %21 : vector<1x8x4xf32> to vector<8x4xf32>
    %23 = tpu.concatenate %12, %15, %17, %20 in 1 : vector<8x1xf32>, vector<8x1xf32>, vector<8x1xf32>, vector<8x1xf32> -> vector<8x4xf32>
    %24 = arith.addf %22, %23 : vector<8x4xf32>
    %c0_18 = arith.constant 0 : index
    %c0_19 = arith.constant 0 : index
    %c0_20 = arith.constant 0 : index
    %25 = vector.load %arg6[%c0_18, %c0_19, %c0_20] : memref<1x8x4xf32, #tpu.memory_space<vmem>>, vector<1x8x4xf32>
    %26 = vector.shape_cast %25 : vector<1x8x4xf32> to vector<8x4xf32>
    %27 = vector.shape_cast %24 : vector<8x4xf32> to vector<1x8x4xf32>
    tpu.vector_store %arg6[%c0_18, %c0_19, %c0_20], %27 {strides = array<i32>} : memref<1x8x4xf32, #tpu.memory_space<vmem>>, vector<1x8x4xf32>,
    return
  }
  func.func @transform_0(%arg0: i32, %arg1: i32) -> (i32, i32, i32) {
    %c0_i32 = arith.constant 0 : i32
    %c0_i32_0 = arith.constant 0 : i32
    return %arg0, %c0_i32, %arg1 : i32, i32, i32
  }
  func.func @transform_1(%arg0: i32, %arg1: i32) -> (i32, i32, i32) {
    %c0_i32 = arith.constant 0 : i32
    %c0_i32_0 = arith.constant 0 : i32
    return %arg0, %c0_i32, %arg1 : i32, i32, i32
  }
  func.func @transform_2(%arg0: i32, %arg1: i32) -> (i32, i32) {
    %c0_i32 = arith.constant 0 : i32
    %c0_i32_0 = arith.constant 0 : i32
    %c0_i32_1 = arith.constant 0 : i32
    return %c0_i32, %c0_i32_0 : i32, i32
  }
  func.func @transform_3(%arg0: i32, %arg1: i32) -> (i32, i32) {
    %c0_i32 = arith.constant 0 : i32
    %c0_i32_0 = arith.constant 0 : i32
    %c0_i32_1 = arith.constant 0 : i32
    return %c0_i32, %c0_i32_0 : i32, i32
  }
  func.func @transform_4(%arg0: i32, %arg1: i32) -> (i32, i32, i32) {
    %c0_i32 = arith.constant 0 : i32
    %c0_i32_0 = arith.constant 0 : i32
    %c0_i32_1 = arith.constant 0 : i32
    return %arg0, %c0_i32, %c0_i32_0 : i32, i32, i32
  }
}

module attributes {stable_mosaic.version = 11 : i64} {
  func.func @_stats2_kernel(%arg0: i32, %arg1: i32, %arg2: memref<1x4x64xf32, #tpu.memory_space<vmem>>, %arg3: memref<8x4xf32, #tpu.memory_space<vmem>>, %arg4: memref<8x8xf32, #tpu.memory_space<vmem>>, %arg5: memref<8x2xf32, #tpu.memory_space<vmem>>, %arg6: memref<1x8x2xf32, #tpu.memory_space<vmem>>) attributes {dimension_semantics = [#tpu.dimension_semantics<parallel>, #tpu.dimension_semantics<arbitrary>], iteration_bounds = array<i64: 2, 1>, scalar_prefetch = 0 : i64, scratch_operands = 0 : i64, tpu.core_type = #tpu.core_type<tc>, window_params = [{transform_indices = @transform_0, window_bounds = array<i64: 1, 4, 64>}, {pipeline_mode = #tpu.pipeline_mode<synchronous>, transform_indices = @transform_1, window_bounds = array<i64: 8, 4>}, {pipeline_mode = #tpu.pipeline_mode<synchronous>, transform_indices = @transform_2, window_bounds = array<i64: 8, 8>}, {pipeline_mode = #tpu.pipeline_mode<synchronous>, transform_indices = @transform_3, window_bounds = array<i64: 8, 2>}, {transform_indices = @transform_4, window_bounds = array<i64: 1, 8, 2>}]} {
    %c0_i32 = arith.constant 0 : i32
    %0 = arith.cmpi eq, %arg1, %c0_i32 : i32
    %1 = arith.extui %0 : i1 to i32
    %c0_i32_0 = arith.constant 0 : i32
    %2 = arith.cmpi ne, %1, %c0_i32_0 : i32
    scf.if %2 {
      %cst_20 = arith.constant 0.000000e+00 : f32
      %33 = vector.broadcast %cst_20 : f32 to vector<8x2xf32>
      %c0_21 = arith.constant 0 : index
      %c0_22 = arith.constant 0 : index
      %c0_23 = arith.constant 0 : index
      %34 = vector.load %arg6[%c0_21, %c0_22, %c0_23] : memref<1x8x2xf32, #tpu.memory_space<vmem>>, vector<1x8x2xf32>
      %35 = vector.shape_cast %34 : vector<1x8x2xf32> to vector<8x2xf32>
      %36 = vector.shape_cast %33 : vector<8x2xf32> to vector<1x8x2xf32>
      tpu.vector_store %arg6[%c0_21, %c0_22, %c0_23], %36 {strides = array<i32>} : memref<1x8x2xf32, #tpu.memory_space<vmem>>, vector<1x8x2xf32>,
    } else {
    }
    %c0 = arith.constant 0 : index
    %c0_1 = arith.constant 0 : index
    %3 = vector.load %arg3[%c0, %c0_1] : memref<8x4xf32, #tpu.memory_space<vmem>>, vector<8x4xf32>
    %c0_2 = arith.constant 0 : index
    %c0_3 = arith.constant 0 : index
    %c0_4 = arith.constant 0 : index
    %4 = vector.load %arg2[%c0_2, %c0_3, %c0_4] : memref<1x4x64xf32, #tpu.memory_space<vmem>>, vector<1x4x64xf32>
    %5 = vector.shape_cast %4 : vector<1x4x64xf32> to vector<4x64xf32>
    %cst = arith.constant dense<0.000000e+00> : vector<8x64xf32>
    %6 = tpu.matmul %3, %5, %cst {dimension_numbers = #tpu.dot_dimension_numbers<[1], [0], [0], [1], [0, 0, 1, 1], [], []>} : vector<8x4xf32>, vector<4x64xf32>, vector<8x64xf32> -> vector<8x64xf32>
    %c0_5 = arith.constant 0 : index
    %c0_6 = arith.constant 0 : index
    %7 = vector.load %arg5[%c0_5, %c0_6] : memref<8x2xf32, #tpu.memory_space<vmem>>, vector<8x2xf32>
    %8 = vector.extract_strided_slice %7 {offsets = [0, 0], sizes = [8, 1], strides = [1, 1]} : vector<8x2xf32> to vector<8x1xf32>
    %9 = vector.broadcast %8 : vector<8x1xf32> to vector<8x64xf32>
    %10 = arith.mulf %6, %9 : vector<8x64xf32>
    %11 = vector.extract_strided_slice %7 {offsets = [0, 1], sizes = [8, 1], strides = [1, 1]} : vector<8x2xf32> to vector<8x1xf32>
    %12 = vector.broadcast %11 : vector<8x1xf32> to vector<8x64xf32>
    %13 = arith.addf %10, %12 : vector<8x64xf32>
    %cst_7 = arith.constant 0.000000e+00 : f32
    %14 = vector.broadcast %cst_7 : f32 to vector<8x64xf32>
    %15 = arith.cmpf oge, %13, %14 : vector<8x64xf32>
    %cst_8 = arith.constant 1.000000e-01 : f32
    %16 = vector.broadcast %cst_8 : f32 to vector<8x64xf32>
    %17 = arith.mulf %16, %13 : vector<8x64xf32>
    %18 = arith.select %15, %13, %17 : vector<8x64xi1>, vector<8x64xf32>
    %c0_9 = arith.constant 0 : index
    %c0_10 = arith.constant 0 : index
    %19 = vector.load %arg4[%c0_9, %c0_10] : memref<8x8xf32, #tpu.memory_space<vmem>>, vector<8x8xf32>
    %cst_11 = arith.constant dense<0.000000e+00> : vector<8x64xf32>
    %20 = tpu.matmul %19, %18, %cst_11 {dimension_numbers = #tpu.dot_dimension_numbers<[1], [0], [0], [1], [0, 0, 1, 1], [], []>} : vector<8x8xf32>, vector<8x64xf32>, vector<8x64xf32> -> vector<8x64xf32>
    %cst_12 = arith.constant dense<0.000000e+00> : vector<8xf32>
    %21 = vector.multi_reduction <add>, %20, %cst_12 [1] : vector<8x64xf32> to vector<8xf32>
    %22 = vector.shape_cast %21 : vector<8xf32> to vector<8x1xf32>
    %23 = arith.mulf %20, %20 : vector<8x64xf32>
    %cst_13 = arith.constant dense<0.000000e+00> : vector<8xf32>
    %24 = vector.multi_reduction <add>, %23, %cst_13 [1] : vector<8x64xf32> to vector<8xf32>
    %25 = vector.shape_cast %24 : vector<8xf32> to vector<8x1xf32>
    %c0_14 = arith.constant 0 : index
    %c0_15 = arith.constant 0 : index
    %c0_16 = arith.constant 0 : index
    %26 = vector.load %arg6[%c0_14, %c0_15, %c0_16] : memref<1x8x2xf32, #tpu.memory_space<vmem>>, vector<1x8x2xf32>
    %27 = vector.shape_cast %26 : vector<1x8x2xf32> to vector<8x2xf32>
    %28 = tpu.concatenate %22, %25 in 1 : vector<8x1xf32>, vector<8x1xf32> -> vector<8x2xf32>
    %29 = arith.addf %27, %28 : vector<8x2xf32>
    %c0_17 = arith.constant 0 : index
    %c0_18 = arith.constant 0 : index
    %c0_19 = arith.constant 0 : index
    %30 = vector.load %arg6[%c0_17, %c0_18, %c0_19] : memref<1x8x2xf32, #tpu.memory_space<vmem>>, vector<1x8x2xf32>
    %31 = vector.shape_cast %30 : vector<1x8x2xf32> to vector<8x2xf32>
    %32 = vector.shape_cast %29 : vector<8x2xf32> to vector<1x8x2xf32>
    tpu.vector_store %arg6[%c0_17, %c0_18, %c0_19], %32 {strides = array<i32>} : memref<1x8x2xf32, #tpu.memory_space<vmem>>, vector<1x8x2xf32>,
    return
  }
  func.func @transform_0(%arg0: i32, %arg1: i32) -> (i32, i32, i32) {
    %c0_i32 = arith.constant 0 : i32
    %c0_i32_0 = arith.constant 0 : i32
    return %arg0, %c0_i32, %arg1 : i32, i32, i32
  }
  func.func @transform_1(%arg0: i32, %arg1: i32) -> (i32, i32) {
    %c0_i32 = arith.constant 0 : i32
    %c0_i32_0 = arith.constant 0 : i32
    %c0_i32_1 = arith.constant 0 : i32
    return %c0_i32, %c0_i32_0 : i32, i32
  }
  func.func @transform_2(%arg0: i32, %arg1: i32) -> (i32, i32) {
    %c0_i32 = arith.constant 0 : i32
    %c0_i32_0 = arith.constant 0 : i32
    %c0_i32_1 = arith.constant 0 : i32
    return %c0_i32, %c0_i32_0 : i32, i32
  }
  func.func @transform_3(%arg0: i32, %arg1: i32) -> (i32, i32) {
    %c0_i32 = arith.constant 0 : i32
    %c0_i32_0 = arith.constant 0 : i32
    %c0_i32_1 = arith.constant 0 : i32
    return %c0_i32, %c0_i32_0 : i32, i32
  }
  func.func @transform_4(%arg0: i32, %arg1: i32) -> (i32, i32, i32) {
    %c0_i32 = arith.constant 0 : i32
    %c0_i32_0 = arith.constant 0 : i32
    %c0_i32_1 = arith.constant 0 : i32
    return %arg0, %c0_i32, %c0_i32_0 : i32, i32, i32
  }
}

module attributes {stable_mosaic.version = 11 : i64} {
  func.func @_apply_kernel(%arg0: i32, %arg1: i32, %arg2: memref<1x4x64xf32, #tpu.memory_space<vmem>>, %arg3: memref<1x4x64xf32, #tpu.memory_space<vmem>>, %arg4: memref<8x4xf32, #tpu.memory_space<vmem>>, %arg5: memref<8x8xf32, #tpu.memory_space<vmem>>, %arg6: memref<8x4xf32, #tpu.memory_space<vmem>>, %arg7: memref<8x6xf32, #tpu.memory_space<vmem>>, %arg8: memref<1x8x64xf32, #tpu.memory_space<vmem>>) attributes {dimension_semantics = [#tpu.dimension_semantics<parallel>, #tpu.dimension_semantics<parallel>], iteration_bounds = array<i64: 2, 1>, scalar_prefetch = 0 : i64, scratch_operands = 0 : i64, tpu.core_type = #tpu.core_type<tc>, window_params = [{transform_indices = @transform_0, window_bounds = array<i64: 1, 4, 64>}, {transform_indices = @transform_1, window_bounds = array<i64: 1, 4, 64>}, {pipeline_mode = #tpu.pipeline_mode<synchronous>, transform_indices = @transform_2, window_bounds = array<i64: 8, 4>}, {pipeline_mode = #tpu.pipeline_mode<synchronous>, transform_indices = @transform_3, window_bounds = array<i64: 8, 8>}, {pipeline_mode = #tpu.pipeline_mode<synchronous>, transform_indices = @transform_4, window_bounds = array<i64: 8, 4>}, {pipeline_mode = #tpu.pipeline_mode<synchronous>, transform_indices = @transform_5, window_bounds = array<i64: 8, 6>}, {transform_indices = @transform_6, window_bounds = array<i64: 1, 8, 64>}]} {
    %c0 = arith.constant 0 : index
    %c0_0 = arith.constant 0 : index
    %0 = vector.load %arg7[%c0, %c0_0] : memref<8x6xf32, #tpu.memory_space<vmem>>, vector<8x6xf32>
    %c0_1 = arith.constant 0 : index
    %c0_2 = arith.constant 0 : index
    %1 = vector.load %arg4[%c0_1, %c0_2] : memref<8x4xf32, #tpu.memory_space<vmem>>, vector<8x4xf32>
    %c0_3 = arith.constant 0 : index
    %c0_4 = arith.constant 0 : index
    %c0_5 = arith.constant 0 : index
    %2 = vector.load %arg2[%c0_3, %c0_4, %c0_5] : memref<1x4x64xf32, #tpu.memory_space<vmem>>, vector<1x4x64xf32>
    %3 = vector.shape_cast %2 : vector<1x4x64xf32> to vector<4x64xf32>
    %cst = arith.constant dense<0.000000e+00> : vector<8x64xf32>
    %4 = tpu.matmul %1, %3, %cst {dimension_numbers = #tpu.dot_dimension_numbers<[1], [0], [0], [1], [0, 0, 1, 1], [], []>} : vector<8x4xf32>, vector<4x64xf32>, vector<8x64xf32> -> vector<8x64xf32>
    %5 = vector.extract_strided_slice %0 {offsets = [0, 0], sizes = [8, 1], strides = [1, 1]} : vector<8x6xf32> to vector<8x1xf32>
    %6 = vector.broadcast %5 : vector<8x1xf32> to vector<8x64xf32>
    %7 = arith.mulf %4, %6 : vector<8x64xf32>
    %8 = vector.extract_strided_slice %0 {offsets = [0, 1], sizes = [8, 1], strides = [1, 1]} : vector<8x6xf32> to vector<8x1xf32>
    %9 = vector.broadcast %8 : vector<8x1xf32> to vector<8x64xf32>
    %10 = arith.addf %7, %9 : vector<8x64xf32>
    %cst_6 = arith.constant 0.000000e+00 : f32
    %11 = vector.broadcast %cst_6 : f32 to vector<8x64xf32>
    %12 = arith.cmpf oge, %10, %11 : vector<8x64xf32>
    %cst_7 = arith.constant 1.000000e-01 : f32
    %13 = vector.broadcast %cst_7 : f32 to vector<8x64xf32>
    %14 = arith.mulf %13, %10 : vector<8x64xf32>
    %15 = arith.select %12, %10, %14 : vector<8x64xi1>, vector<8x64xf32>
    %c0_8 = arith.constant 0 : index
    %c0_9 = arith.constant 0 : index
    %16 = vector.load %arg5[%c0_8, %c0_9] : memref<8x8xf32, #tpu.memory_space<vmem>>, vector<8x8xf32>
    %cst_10 = arith.constant dense<0.000000e+00> : vector<8x64xf32>
    %17 = tpu.matmul %16, %15, %cst_10 {dimension_numbers = #tpu.dot_dimension_numbers<[1], [0], [0], [1], [0, 0, 1, 1], [], []>} : vector<8x8xf32>, vector<8x64xf32>, vector<8x64xf32> -> vector<8x64xf32>
    %18 = vector.extract_strided_slice %0 {offsets = [0, 2], sizes = [8, 1], strides = [1, 1]} : vector<8x6xf32> to vector<8x1xf32>
    %19 = vector.broadcast %18 : vector<8x1xf32> to vector<8x64xf32>
    %20 = arith.mulf %17, %19 : vector<8x64xf32>
    %21 = vector.extract_strided_slice %0 {offsets = [0, 3], sizes = [8, 1], strides = [1, 1]} : vector<8x6xf32> to vector<8x1xf32>
    %22 = vector.broadcast %21 : vector<8x1xf32> to vector<8x64xf32>
    %23 = arith.addf %20, %22 : vector<8x64xf32>
    %cst_11 = arith.constant 0.000000e+00 : f32
    %24 = vector.broadcast %cst_11 : f32 to vector<8x64xf32>
    %25 = arith.cmpf oge, %23, %24 : vector<8x64xf32>
    %cst_12 = arith.constant 1.000000e-01 : f32
    %26 = vector.broadcast %cst_12 : f32 to vector<8x64xf32>
    %27 = arith.mulf %26, %23 : vector<8x64xf32>
    %28 = arith.select %25, %23, %27 : vector<8x64xi1>, vector<8x64xf32>
    %c0_13 = arith.constant 0 : index
    %c0_14 = arith.constant 0 : index
    %29 = vector.load %arg6[%c0_13, %c0_14] : memref<8x4xf32, #tpu.memory_space<vmem>>, vector<8x4xf32>
    %c0_15 = arith.constant 0 : index
    %c0_16 = arith.constant 0 : index
    %c0_17 = arith.constant 0 : index
    %30 = vector.load %arg3[%c0_15, %c0_16, %c0_17] : memref<1x4x64xf32, #tpu.memory_space<vmem>>, vector<1x4x64xf32>
    %31 = vector.shape_cast %30 : vector<1x4x64xf32> to vector<4x64xf32>
    %cst_18 = arith.constant dense<0.000000e+00> : vector<8x64xf32>
    %32 = tpu.matmul %29, %31, %cst_18 {dimension_numbers = #tpu.dot_dimension_numbers<[1], [0], [0], [1], [0, 0, 1, 1], [], []>} : vector<8x4xf32>, vector<4x64xf32>, vector<8x64xf32> -> vector<8x64xf32>
    %33 = vector.extract_strided_slice %0 {offsets = [0, 4], sizes = [8, 1], strides = [1, 1]} : vector<8x6xf32> to vector<8x1xf32>
    %34 = vector.broadcast %33 : vector<8x1xf32> to vector<8x64xf32>
    %35 = arith.mulf %32, %34 : vector<8x64xf32>
    %36 = vector.extract_strided_slice %0 {offsets = [0, 5], sizes = [8, 1], strides = [1, 1]} : vector<8x6xf32> to vector<8x1xf32>
    %37 = vector.broadcast %36 : vector<8x1xf32> to vector<8x64xf32>
    %38 = arith.addf %35, %37 : vector<8x64xf32>
    %cst_19 = arith.constant 0.000000e+00 : f32
    %39 = vector.broadcast %cst_19 : f32 to vector<8x64xf32>
    %40 = arith.cmpf oge, %38, %39 : vector<8x64xf32>
    %cst_20 = arith.constant 1.000000e-01 : f32
    %41 = vector.broadcast %cst_20 : f32 to vector<8x64xf32>
    %42 = arith.mulf %41, %38 : vector<8x64xf32>
    %43 = arith.select %40, %38, %42 : vector<8x64xi1>, vector<8x64xf32>
    %44 = arith.addf %28, %43 : vector<8x64xf32>
    %c0_21 = arith.constant 0 : index
    %c0_22 = arith.constant 0 : index
    %c0_23 = arith.constant 0 : index
    %45 = vector.load %arg8[%c0_21, %c0_22, %c0_23] : memref<1x8x64xf32, #tpu.memory_space<vmem>>, vector<1x8x64xf32>
    %46 = vector.shape_cast %45 : vector<1x8x64xf32> to vector<8x64xf32>
    %47 = vector.shape_cast %44 : vector<8x64xf32> to vector<1x8x64xf32>
    tpu.vector_store %arg8[%c0_21, %c0_22, %c0_23], %47 {strides = array<i32>} : memref<1x8x64xf32, #tpu.memory_space<vmem>>, vector<1x8x64xf32>,
    return
  }
  func.func @transform_0(%arg0: i32, %arg1: i32) -> (i32, i32, i32) {
    %c0_i32 = arith.constant 0 : i32
    %c0_i32_0 = arith.constant 0 : i32
    return %arg0, %c0_i32, %arg1 : i32, i32, i32
  }
  func.func @transform_1(%arg0: i32, %arg1: i32) -> (i32, i32, i32) {
    %c0_i32 = arith.constant 0 : i32
    %c0_i32_0 = arith.constant 0 : i32
    return %arg0, %c0_i32, %arg1 : i32, i32, i32
  }
  func.func @transform_2(%arg0: i32, %arg1: i32) -> (i32, i32) {
    %c0_i32 = arith.constant 0 : i32
    %c0_i32_0 = arith.constant 0 : i32
    %c0_i32_1 = arith.constant 0 : i32
    return %c0_i32, %c0_i32_0 : i32, i32
  }
  func.func @transform_3(%arg0: i32, %arg1: i32) -> (i32, i32) {
    %c0_i32 = arith.constant 0 : i32
    %c0_i32_0 = arith.constant 0 : i32
    %c0_i32_1 = arith.constant 0 : i32
    return %c0_i32, %c0_i32_0 : i32, i32
  }
  func.func @transform_4(%arg0: i32, %arg1: i32) -> (i32, i32) {
    %c0_i32 = arith.constant 0 : i32
    %c0_i32_0 = arith.constant 0 : i32
    %c0_i32_1 = arith.constant 0 : i32
    return %c0_i32, %c0_i32_0 : i32, i32
  }
  func.func @transform_5(%arg0: i32, %arg1: i32) -> (i32, i32) {
    %c0_i32 = arith.constant 0 : i32
    %c0_i32_0 = arith.constant 0 : i32
    %c0_i32_1 = arith.constant 0 : i32
    return %c0_i32, %c0_i32_0 : i32, i32
  }
  func.func @transform_6(%arg0: i32, %arg1: i32) -> (i32, i32, i32) {
    %c0_i32 = arith.constant 0 : i32
    %c0_i32_0 = arith.constant 0 : i32
    return %arg0, %c0_i32, %arg1 : i32, i32, i32
  }
}

</mosaic_0001>

<llo_original>
// kernel: downsampling_block.5
$region0: #{downsampling_block.5}
  #allocation0 [shape = 'u32[]', space=smem, size = 0x4, offset = 0x4, fixed_abs, tag = 'smem constant byte address 0x4 - core index']
  #allocation1 [shape = 'u32[144,128]{1,0:T(1,128)}', space=vmem, size = 0x12000, scoped, tag = 'internal scratch']
  %s0 = inlined_call_operand.vmem [shape: f32[2,4,64], index: 0, kind: input, shape index: {}]
  %s1 = inlined_call_operand.vmem [shape: f32[2,4,64], index: 1, kind: input, shape index: {}]
  %s2 = inlined_call_operand.vmem [shape: f32[8,4], index: 2, kind: input, shape index: {}]
  %s3 = inlined_call_operand.vmem [shape: f32[8,8], index: 3, kind: input, shape index: {}]
  %s4 = inlined_call_operand.vmem [shape: f32[8,4], index: 4, kind: input, shape index: {}]
  %s5 = inlined_call_operand.vmem [shape: f32[8,6], index: 5, kind: input, shape index: {}]
  %s6 = inlined_call_operand.vmem [shape: f32[2,8,64], index: 6, kind: output, shape index: {}]
  %s7 = sld [smem:[#allocation0]]
  $region57: #{downsampling_block.5} parent=0
    _
  %s9 = ssub.s32 1, %s7
  %s10 = scalar_select 0, %s9, %s7
  loop: start=0, step=1, limit=4
  $region2: #{downsampling_block.5} parent=0 // loop_pre_header
    _
  $region3: #{downsampling_block.5} parent=0 // loop_header
    %s12 = sphi 0, %s16
    %p13 = scmp.ge.s32.totalorder %s12, 4
    %s19 = sphi 0, %s31
    %s20 = sphi 0, %s27
    %s21 = sphi 0, %s19
    %s22 = sphi 0, %s20
    %s23 = sphi 0, %s21
    %s24 = sphi 0, %s22
    %s36 = sphi 0, %s38
    %s39 = sphi 0, %s36
    %s40 = sphi 0, %s39
    %s56 = sphi 0, %s40
    %s64 = sphi 0, %s66
    %s67 = sphi 0, %s64
    %s68 = sphi 0, %s67
    %s84 = sphi 0, %s68
    %s88 = sphi 0, %s88
    %s90 = sphi 0, %s88
    %s91 = sphi 0, %s90
    %s105 = sphi 0, %s91
    %s109 = sphi 0, %s109
    %s111 = sphi 0, %s109
    %s112 = sphi 0, %s111
    %s126 = sphi 0, %s112
    %s130 = sphi 0, %s130
    %s132 = sphi 0, %s130
    %s133 = sphi 0, %s132
    %s147 = sphi 0, %s133
    %s151 = sphi 0, %s151
    %s153 = sphi 0, %s151
    %s154 = sphi 0, %s153
    %s168 = sphi 0, %s154
    %s176 = sphi 0, %s178
    %s179 = sphi 0, %s176
    %s180 = sphi 0, %s179
    %s196 = sphi 0, %s180
  $region4: #{downsampling_block.5} parent=0 // loop_header_branch
    %15 = sbr.rel (%p13) target = $region8
  $region5: #{downsampling_block.5} parent=0 // loop_body
    %s17 = ssub.s32 %s12, 1
    %s18 = ssub.s32 %s12, 2
    %s25 = sadd.s32 1, %s20
    %p26 = scmp.ge.s32.totalorder %s25, 1
    %s27 = scalar_select %p26, 0, %s25
    %s28 = sadd.s32 1, %s19
    %s29 = scalar_select %p26, %s28, %s19
    %p30 = scmp.ge.s32.totalorder %s29, 2
    %s31 = scalar_select %p30, 0, %s29
    %s32 = ssub.s32 %s19, %s31
    %s33 = ssub.s32 %s20, %s27
    %s34 = sor.u32 %s32, %s33
    %p35 = scmp.eq.s32.totalorder %s34, 0
    %s37 = sadd.s32 %s36, 1
    %s38 = scalar_select %p35, %s36, %s37
    %p41 = pneg %p35
    %p42 = scmp.eq.s32.totalorder %s12, 1
    %p43 = por %p41, %p42
    %p44 = scmp.ne.s32.totalorder %s36, %s39
    %p45 = scmp.eq.s32.totalorder %s12, 0
    %p46 = por %p44, %p45
    %p47 = scmp.ne.s32.totalorder %s36, %s39
    %p48 = scmp.eq.s32.totalorder %s17, 1
    %p49 = por %p47, %p48
    %p50 = scmp.ne.s32.totalorder %s39, %s40
    %p51 = scmp.eq.s32.totalorder %s17, 0
    %p52 = por %p50, %p51
    %p53 = scmp.ne.s32.totalorder %s39, %s40
    %p54 = scmp.eq.s32.totalorder %s18, 1
    %p55 = por %p53, %p54
    %p57 = scmp.ne.s32.totalorder %s40, %s56
    %p58 = scmp.eq.s32.totalorder %s18, 0
    %p59 = por %p57, %p58
    %s60 = ssub.s32 %s19, %s31
    %s61 = ssub.s32 %s20, %s27
    %s62 = sor.u32 %s60, %s61
    %p63 = scmp.eq.s32.totalorder %s62, 0
    %s65 = sadd.s32 %s64, 1
    %s66 = scalar_select %p63, %s64, %s65
    %p69 = pneg %p63
    %p70 = scmp.eq.s32.totalorder %s12, 1
    %p71 = por %p69, %p70
    %p72 = scmp.ne.s32.totalorder %s64, %s67
    %p73 = scmp.eq.s32.totalorder %s12, 0
    %p74 = por %p72, %p73
    %p75 = scmp.ne.s32.totalorder %s64, %s67
    %p76 = scmp.eq.s32.totalorder %s17, 1
    %p77 = por %p75, %p76
    %p78 = scmp.ne.s32.totalorder %s67, %s68
    %p79 = scmp.eq.s32.totalorder %s17, 0
    %p80 = por %p78, %p79
    %p81 = scmp.ne.s32.totalorder %s67, %s68
    %p82 = scmp.eq.s32.totalorder %s18, 1
    %p83 = por %p81, %p82
    %p85 = scmp.ne.s32.totalorder %s68, %s84
    %p86 = scmp.eq.s32.totalorder %s18, 0
    %p87 = por %p85, %p86
    %s89 = sadd.s32 %s88, 1
    %p92 = scmp.eq.s32.totalorder %s12, 1
    %p93 = scmp.ne.s32.totalorder %s88, %s90
    %p94 = scmp.eq.s32.totalorder %s12, 0
    %p95 = por %p93, %p94
    %p96 = scmp.ne.s32.totalorder %s88, %s90
    %p97 = scmp.eq.s32.totalorder %s17, 1
    %p98 = por %p96, %p97
    %p99 = scmp.ne.s32.totalorder %s90, %s91
    %p100 = scmp.eq.s32.totalorder %s17, 0
    %p101 = por %p99, %p100
    %p102 = scmp.ne.s32.totalorder %s90, %s91
    %p103 = scmp.eq.s32.totalorder %s18, 1
    %p104 = por %p102, %p103
    %p106 = scmp.ne.s32.totalorder %s91, %s105
    %p107 = scmp.eq.s32.totalorder %s18, 0
    %p108 = por %p106, %p107
    %s110 = sadd.s32 %s109, 1
    %p113 = scmp.eq.s32.totalorder %s12, 1
    %p114 = scmp.ne.s32.totalorder %s109, %s111
    %p115 = scmp.eq.s32.totalorder %s12, 0
    %p116 = por %p114, %p115
    %p117 = scmp.ne.s32.totalorder %s109, %s111
    %p118 = scmp.eq.s32.totalorder %s17, 1
    %p119 = por %p117, %p118
    %p120 = scmp.ne.s32.totalorder %s111, %s112
    %p121 = scmp.eq.s32.totalorder %s17, 0
    %p122 = por %p120, %p121
    %p123 = scmp.ne.s32.totalorder %s111, %s112
    %p124 = scmp.eq.s32.totalorder %s18, 1
    %p125 = por %p123, %p124
    %p127 = scmp.ne.s32.totalorder %s112, %s126
    %p128 = scmp.eq.s32.totalorder %s18, 0
    %p129 = por %p127, %p128
    %s131 = sadd.s32 %s130, 1
    %p134 = scmp.eq.s32.totalorder %s12, 1
    %p135 = scmp.ne.s32.totalorder %s130, %s132
    %p136 = scmp.eq.s32.totalorder %s12, 0
    %p137 = por %p135, %p136
    %p138 = scmp.ne.s32.totalorder %s130, %s132
    %p139 = scmp.eq.s32.totalorder %s17, 1
    %p140 = por %p138, %p139
    %p141 = scmp.ne.s32.totalorder %s132, %s133
    %p142 = scmp.eq.s32.totalorder %s17, 0
    %p143 = por %p141, %p142
    %p144 = scmp.ne.s32.totalorder %s132, %s133
    %p145 = scmp.eq.s32.totalorder %s18, 1
    %p146 = por %p144, %p145
    %p148 = scmp.ne.s32.totalorder %s133, %s147
    %p149 = scmp.eq.s32.totalorder %s18, 0
    %p150 = por %p148, %p149
    %s152 = sadd.s32 %s151, 1
    %p155 = scmp.eq.s32.totalorder %s12, 1
    %p156 = scmp.ne.s32.totalorder %s151, %s153
    %p157 = scmp.eq.s32.totalorder %s12, 0
    %p158 = por %p156, %p157
    %p159 = scmp.ne.s32.totalorder %s151, %s153
    %p160 = scmp.eq.s32.totalorder %s17, 1
    %p161 = por %p159, %p160
    %p162 = scmp.ne.s32.totalorder %s153, %s154
    %p163 = scmp.eq.s32.totalorder %s17, 0
    %p164 = por %p162, %p163
    %p165 = scmp.ne.s32.totalorder %s153, %s154
    %p166 = scmp.eq.s32.totalorder %s18, 1
    %p167 = por %p165, %p166
    %p169 = scmp.ne.s32.totalorder %s154, %s168
    %p170 = scmp.eq.s32.totalorder %s18, 0
    %p171 = por %p169, %p170
    %s172 = ssub.s32 %s19, %s31
    %s173 = ssub.s32 %s20, %s27
    %s174 = sor.u32 %s172, %s173
    %p175 = scmp.eq.s32.totalorder %s174, 0
    %s177 = sadd.s32 %s176, 1
    %s178 = scalar_select %p175, %s176, %s177
    %p181 = pneg %p175
    %p182 = scmp.eq.s32.totalorder %s12, 1
    %p183 = por %p181, %p182
    %p184 = scmp.ne.s32.totalorder %s176, %s179
    %p185 = scmp.eq.s32.totalorder %s12, 0
    %p186 = por %p184, %p185
    %p187 = scmp.ne.s32.totalorder %s176, %s179
    %p188 = scmp.eq.s32.totalorder %s17, 1
    %p189 = por %p187, %p188
    %p190 = scmp.ne.s32.totalorder %s179, %s180
    %p191 = scmp.eq.s32.totalorder %s17, 0
    %p192 = por %p190, %p191
    %p193 = scmp.ne.s32.totalorder %s179, %s180
    %p194 = scmp.eq.s32.totalorder %s18, 1
    %p195 = por %p193, %p194
    %p197 = scmp.ne.s32.totalorder %s180, %s196
    %p198 = scmp.eq.s32.totalorder %s18, 0
    %p199 = por %p197, %p198
    %p200 = scmp.le.s32.totalorder 1, %s12
    %p201 = scmp.lt.s32.totalorder %s12, 3
    %p202 = pnand %p200, %p201
    %p203 = pneg %p202
    // Predicated region
    $region9: #{downsampling_block.5} parent=5 // pred_check
      _
    $region10: #{downsampling_block.5} parent=5 // pred_check_branch
      %205 = sbr.rel (%p202) target = $region12
    $region11: #{downsampling_block.5} parent=5 // pred_region
      %s206 = ssub.s32 %s12, 1
      // Predicated region
      $region13: #{downsampling_block.5} parent=11 // pred_check
        %p207 = pneg %p101
      $region14: #{downsampling_block.5} parent=11 // pred_check_branch
        %209 = sbr.rel (%p207) target = $region16
      $region15: #{downsampling_block.5} parent=11 // pred_region
        _
      $region16: #{downsampling_block.5} parent=11 // pred_fallthru
        _
      // Predicated region
      $region17: #{downsampling_block.5} parent=11 // pred_check
        %p210 = pneg %p122
      $region18: #{downsampling_block.5} parent=11 // pred_check_branch
        %212 = sbr.rel (%p210) target = $region20
      $region19: #{downsampling_block.5} parent=11 // pred_region
        _
      $region20: #{downsampling_block.5} parent=11 // pred_fallthru
        _
      // Predicated region
      $region21: #{downsampling_block.5} parent=11 // pred_check
        %p213 = pneg %p143
      $region22: #{downsampling_block.5} parent=11 // pred_check_branch
        %215 = sbr.rel (%p213) target = $region24
      $region23: #{downsampling_block.5} parent=11 // pred_region
        _
      $region24: #{downsampling_block.5} parent=11 // pred_fallthru
        _
      // Predicated region
      $region25: #{downsampling_block.5} parent=11 // pred_check
        %p216 = pneg %p164
      $region26: #{downsampling_block.5} parent=11 // pred_check_branch
        %218 = sbr.rel (%p216) target = $region28
      $region27: #{downsampling_block.5} parent=11 // pred_region
        _
      $region28: #{downsampling_block.5} parent=11 // pred_fallthru
        _
    $region12: #{downsampling_block.5} parent=5 // pred_fallthru
      _
    %p219 = scmp.lt.s32.totalorder %s12, 2
    // Predicated region
    $region29: #{downsampling_block.5} parent=5 // pred_check
      %p220 = pneg %p219
    $region30: #{downsampling_block.5} parent=5 // pred_check_branch
      %222 = sbr.rel (%p220) target = $region32
    $region31: #{downsampling_block.5} parent=5 // pred_region
      // Predicated region
      $region33: #{downsampling_block.5} parent=31 // pred_check
        %p223 = pneg %p46
      $region34: #{downsampling_block.5} parent=31 // pred_check_branch
        %225 = sbr.rel (%p223) target = $region36
      $region35: #{downsampling_block.5} parent=31 // pred_region
        %p226 = scmp.lt.s32.totalorder %s19, 1
        %s227 = scalar_select %p226, %s19, 1
        %p228 = scmp.lt.s32.totalorder %s20, 0
        %s229 = scalar_select %p228, %s20, 0
        %s230 = sadd.s32 %s229, %s227
        %s231 = smul.addr %s230, 4
        %s232 = scalar_lea.vmem %s0, %s231
      $region36: #{downsampling_block.5} parent=31 // pred_fallthru
        _
      // Predicated region
      $region37: #{downsampling_block.5} parent=31 // pred_check
        %p233 = pneg %p74
      $region38: #{downsampling_block.5} parent=31 // pred_check_branch
        %235 = sbr.rel (%p233) target = $region40
      $region39: #{downsampling_block.5} parent=31 // pred_region
        %p236 = scmp.lt.s32.totalorder %s19, 1
        %s237 = scalar_select %p236, %s19, 1
        %p238 = scmp.lt.s32.totalorder %s20, 0
        %s239 = scalar_select %p238, %s20, 0
        %s240 = sadd.s32 %s239, %s237
        %s241 = smul.addr %s240, 4
        %s242 = scalar_lea.vmem %s1, %s241
      $region40: #{downsampling_block.5} parent=31 // pred_fallthru
        _
    $region32: #{downsampling_block.5} parent=5 // pred_fallthru
      _
    %p243 = scmp.le.s32.totalorder 1, %s12
    %p244 = scmp.lt.s32.totalorder %s12, 3
    %p245 = pnand %p243, %p244
    %p246 = pneg %p245
    // Predicated region
    $region41: #{downsampling_block.5} parent=5 // pred_check
      _
    $region42: #{downsampling_block.5} parent=5 // pred_check_branch
      %248 = sbr.rel (%p245) target = $region44
    $region43: #{downsampling_block.5} parent=5 // pred_region
      %s249 = ssub.s32 %s12, 1
      %p250 = scmp.lt.s32.totalorder %s21, 1
      %s251 = scalar_select %p250, %s21, 1
      %p252 = scmp.lt.s32.totalorder %s22, 0
      %s253 = scalar_select %p252, %s22, 0
      %s254 = sadd.s32 %s253, %s251
      %s255 = smul.addr %s254, 4
      %s256 = scalar_lea.vmem %s0, %s255
      %p257 = pneg %p52
      %p258 = pneg %p49
      %p259 = scmp.lt.s32.totalorder %s21, 1
      %s260 = scalar_select %p259, %s21, 1
      %p261 = scmp.lt.s32.totalorder %s22, 0
      %s262 = scalar_select %p261, %s22, 0
      %s263 = sadd.s32 %s262, %s260
      %s264 = smul.addr %s263, 4
      %s265 = scalar_lea.vmem %s1, %s264
      %p266 = pneg %p80
      %p267 = pneg %p77
      %p268 = pneg %p101
      %p269 = pneg %p98
      %p270 = pneg %p122
      %p271 = pneg %p119
      %p272 = pneg %p143
      %p273 = pneg %p140
      %p274 = pneg %p164
      %p275 = pneg %p161
      %p276 = pneg %p192
      %p277 = pneg %p189
      %p278 = scmp.lt.s32.totalorder %s21, 1
      %s279 = scalar_select %p278, %s21, 1
      %p280 = scmp.lt.s32.totalorder %s22, 0
      %s281 = scalar_select %p280, %s22, 0
      %s282 = sadd.s32 %s281, %s279
      %s283 = smul.addr %s282, 8
      %s284 = scalar_lea.vmem %s6, %s283
      %p285 = scmp.lt.s32.totalorder %s21, 1
      %s286 = scalar_select %p285, %s21, 1
      %p287 = scmp.lt.s32.totalorder %s22, 0
      %s288 = scalar_select %p287, %s22, 0
      %s289 = sadd.s32 %s288, %s286
      %s290 = smul.addr %s289, 4
      %s291 = scalar_lea.vmem %s0, %s290
      %p292 = scmp.lt.s32.totalorder %s21, 1
      %s293 = scalar_select %p292, %s21, 1
      %p294 = scmp.lt.s32.totalorder %s22, 0
      %s295 = scalar_select %p294, %s22, 0
      %s296 = sadd.s32 %s295, %s293
      %s297 = smul.addr %s296, 4
      %s298 = scalar_lea.vmem %s1, %s297
      %p299 = scmp.lt.s32.totalorder %s21, 1
      %s300 = scalar_select %p299, %s21, 1
      %p301 = scmp.lt.s32.totalorder %s22, 0
      %s302 = scalar_select %p301, %s22, 0
      %s303 = sadd.s32 %s302, %s300
      %s304 = smul.addr %s303, 8
      %s305 = scalar_lea.vmem %s6, %s304
      %v306 = vld [vmem:[%s5] sm:$0xff]
      %v307 = vld [vmem:[%s2] sm:$0xff]
      %v308 = vld [vmem:[%s291] sm:$0xf]
      %vm309 = vcmask 31744
      %v311 = vsel %vm309, %v307, 0
      %vm313 = vcmask 1043456
      %v315 = vsel %vm313, %v308, 0
      %317 = vmatprep.subr.mxu0 0.0
      %318 = vmatpush1.msra.mxu0 %v315
      %319 = vmatprep.subr.mxu0 0.0
      %320 = vmatpush1.msra.mxu0 0.0
      %321 = vmatprep.subr.mxu0 0.0
      %322 = vmatpush1.msra.mxu0 0.0
      %323 = vmatprep.subr.mxu0 0.0
      %324 = vmatpush1.msra.mxu0 0.0
      %325 = vmatprep.subr.mxu0 0.0
      %326 = vmatpush1.msra.mxu0 0.0
      %327 = vmatprep.subr.mxu0 0.0
      %328 = vmatpush1.msra.mxu0 0.0
      %329 = vmatprep.subr.mxu0 0.0
      %330 = vmatpush1.msra.mxu0 0.0
      %331 = vmatprep.subr.mxu0 0.0
      %332 = vmatpush1.msra.mxu0 0.0
      %333 = vmatprep.subr.mxu0 0.0
      %334 = vmatpush1.msra.mxu0 0.0
      %335 = vmatprep.subr.mxu0 0.0
      %336 = vmatpush1.msra.mxu0 0.0
      %337 = vmatprep.subr.mxu0 0.0
      %338 = vmatpush1.msra.mxu0 0.0
      %339 = vmatprep.subr.mxu0 0.0
      %340 = vmatpush1.msra.mxu0 0.0
      %341 = vmatprep.subr.mxu0 0.0
      %342 = vmatpush1.msra.mxu0 0.0
      %343 = vmatprep.subr.mxu0 0.0
      %344 = vmatpush1.msra.mxu0 0.0
      %345 = vmatprep.subr.mxu0 0.0
      %346 = vmatpush1.msra.mxu0 0.0
      %347 = vmatprep.subr.mxu0 0.0
      %348 = vmatpush1.msra.mxu0 0.0
      %349 = vmatprep.subr.mxu0 0.0
      %350 = vmatpush1.msra.mxu0 0.0
      %351 = vmatprep.subr.mxu0 0.0
      %352 = vmatpush1.msra.mxu0 0.0
      %353 = vmatprep.subr.mxu0 0.0
      %354 = vmatpush1.msra.mxu0 0.0
      %355 = vmatprep.subr.mxu0 0.0
      %356 = vmatpush1.msra.mxu0 0.0
      %357 = vmatprep.subr.mxu0 0.0
      %358 = vmatpush1.msra.mxu0 0.0
      %359 = vmatprep.subr.mxu0 0.0
      %360 = vmatpush1.msra.mxu0 0.0
      %361 = vmatprep.subr.mxu0 0.0
      %362 = vmatpush1.msra.mxu0 0.0
      %363 = vmatprep.subr.mxu0 0.0
      %364 = vmatpush1.msra.mxu0 0.0
      %365 = vmatprep.subr.mxu0 0.0
      %366 = vmatpush1.msra.mxu0 0.0
      %367 = vmatprep.subr.mxu0 0.0
      %368 = vmatpush1.msra.mxu0 0.0
      %369 = vmatprep.subr.mxu0 0.0
      %370 = vmatpush1.msra.mxu0 0.0
      %371 = vmatprep.subr.mxu0 0.0
      %372 = vmatpush1.msra.mxu0 0.0
      %373 = vmatprep.subr.mxu0 0.0
      %374 = vmatpush1.msra.mxu0 0.0
      %375 = vmatprep.subr.mxu0 0.0
      %376 = vmatpush1.msra.mxu0 0.0
      %377 = vmatprep.subr.mxu0 0.0
      %378 = vmatpush1.msra.mxu0 0.0
      %379 = vmatprep.subr.mxu0 0.0
      %380 = vmatpush1.msra.mxu0 0.0
      %381 = vmatprep.mubr.f32.mxu0 0.0
      %382 = vmatmul.mubr.f32.gmra.mrb[0].mxu0 %v311
      %v383 = vpop.f32.mrb[0].mxu0
      %v384 = vadd.f32 0.0, %v383
      %v385 = vpop.f32.mrb[0].mxu0
      %386 = vdwg.mxu0
      %388 = vset.pattern.permute.xlu0 0
      %389 = vperm.xlu0 %388, %v306
      %v390 = vpop.permute.xlu0 %389
      %v392 = vmul.f32 %v384, %v390
      %393 = vset.pattern.permute.xlu0 1
      %394 = vperm.xlu0 %393, %v306
      %v395 = vpop.permute.xlu0 %394
      %v397 = vadd.f32 %v392, %v395
      %vm398 = vcmp.ge.f32.partialorder %v397, 0.0
      %v399 = vmul.f32 %v397, 0.1
      %v400 = vsel %vm398, %v397, %v399
      %v401 = vld [vmem:[%s3] sm:$0xff]
      %vm402 = vcmask 64512
      %v404 = vsel %vm402, %v401, 0
      %406 = vmatprep.subr.mxu0 0.0
      %407 = vmatpush1.msra.mxu0 %v400
      %408 = vmatprep.subr.mxu0 0.0
      %409 = vmatpush1.msra.mxu0 0.0
      %410 = vmatprep.subr.mxu0 0.0
      %411 = vmatpush1.msra.mxu0 0.0
      %412 = vmatprep.subr.mxu0 0.0
      %413 = vmatpush1.msra.mxu0 0.0
      %414 = vmatprep.subr.mxu0 0.0
      %415 = vmatpush1.msra.mxu0 0.0
      %416 = vmatprep.subr.mxu0 0.0
      %417 = vmatpush1.msra.mxu0 0.0
      %418 = vmatprep.subr.mxu0 0.0
      %419 = vmatpush1.msra.mxu0 0.0
      %420 = vmatprep.subr.mxu0 0.0
      %421 = vmatpush1.msra.mxu0 0.0
      %422 = vmatprep.subr.mxu0 0.0
      %423 = vmatpush1.msra.mxu0 0.0
      %424 = vmatprep.subr.mxu0 0.0
      %425 = vmatpush1.msra.mxu0 0.0
      %426 = vmatprep.subr.mxu0 0.0
      %427 = vmatpush1.msra.mxu0 0.0
      %428 = vmatprep.subr.mxu0 0.0
      %429 = vmatpush1.msra.mxu0 0.0
      %430 = vmatprep.subr.mxu0 0.0
      %431 = vmatpush1.msra.mxu0 0.0
      %432 = vmatprep.subr.mxu0 0.0
      %433 = vmatpush1.msra.mxu0 0.0
      %434 = vmatprep.subr.mxu0 0.0
      %435 = vmatpush1.msra.mxu0 0.0
      %436 = vmatprep.subr.mxu0 0.0
      %437 = vmatpush1.msra.mxu0 0.0
      %438 = vmatprep.subr.mxu0 0.0
      %439 = vmatpush1.msra.mxu0 0.0
      %440 = vmatprep.subr.mxu0 0.0
      %441 = vmatpush1.msra.mxu0 0.0
      %442 = vmatprep.subr.mxu0 0.0
      %443 = vmatpush1.msra.mxu0 0.0
      %444 = vmatprep.subr.mxu0 0.0
      %445 = vmatpush1.msra.mxu0 0.0
      %446 = vmatprep.subr.mxu0 0.0
      %447 = vmatpush1.msra.mxu0 0.0
      %448 = vmatprep.subr.mxu0 0.0
      %449 = vmatpush1.msra.mxu0 0.0
      %450 = vmatprep.subr.mxu0 0.0
      %451 = vmatpush1.msra.mxu0 0.0
      %452 = vmatprep.subr.mxu0 0.0
      %453 = vmatpush1.msra.mxu0 0.0
      %454 = vmatprep.subr.mxu0 0.0
      %455 = vmatpush1.msra.mxu0 0.0
      %456 = vmatprep.subr.mxu0 0.0
      %457 = vmatpush1.msra.mxu0 0.0
      %458 = vmatprep.subr.mxu0 0.0
      %459 = vmatpush1.msra.mxu0 0.0
      %460 = vmatprep.subr.mxu0 0.0
      %461 = vmatpush1.msra.mxu0 0.0
      %462 = vmatprep.subr.mxu0 0.0
      %463 = vmatpush1.msra.mxu0 0.0
      %464 = vmatprep.subr.mxu0 0.0
      %465 = vmatpush1.msra.mxu0 0.0
      %466 = vmatprep.subr.mxu0 0.0
      %467 = vmatpush1.msra.mxu0 0.0
      %468 = vmatprep.subr.mxu0 0.0
      %469 = vmatpush1.msra.mxu0 0.0
      %470 = vmatprep.mubr.f32.mxu0 0.0
      %471 = vmatmul.mubr.f32.gmra.mrb[0].mxu0 %v404
      %v472 = vpop.f32.mrb[0].mxu0
      %v473 = vadd.f32 0.0, %v472
      %v474 = vpop.f32.mrb[0].mxu0
      %475 = vdwg.mxu0
      %476 = vset.pattern.permute.xlu0 2
      %477 = vperm.xlu0 %476, %v306
      %v478 = vpop.permute.xlu0 %477
      %v480 = vmul.f32 %v473, %v478
      %481 = vset.pattern.permute.xlu0 3
      %482 = vperm.xlu0 %481, %v306
      %v483 = vpop.permute.xlu0 %482
      %v485 = vadd.f32 %v480, %v483
      %vm486 = vcmp.ge.f32.partialorder %v485, 0.0
      %v487 = vmul.f32 %v485, 0.1
      %v488 = vsel %vm486, %v485, %v487
      %v489 = vld [vmem:[%s4] sm:$0xff]
      %v490 = vld [vmem:[%s298] sm:$0xf]
      %v492 = vsel %vm309, %v489, 0
      %v495 = vsel %vm313, %v490, 0
      %497 = vmatprep.subr.mxu0 0.0
      %498 = vmatpush1.msra.mxu0 %v495
      %499 = vmatprep.subr.mxu0 0.0
      %500 = vmatpush1.msra.mxu0 0.0
      %501 = vmatprep.subr.mxu0 0.0
      %502 = vmatpush1.msra.mxu0 0.0
      %503 = vmatprep.subr.mxu0 0.0
      %504 = vmatpush1.msra.mxu0 0.0
      %505 = vmatprep.subr.mxu0 0.0
      %506 = vmatpush1.msra.mxu0 0.0
      %507 = vmatprep.subr.mxu0 0.0
      %508 = vmatpush1.msra.mxu0 0.0
      %509 = vmatprep.subr.mxu0 0.0
      %510 = vmatpush1.msra.mxu0 0.0
      %511 = vmatprep.subr.mxu0 0.0
      %512 = vmatpush1.msra.mxu0 0.0
      %513 = vmatprep.subr.mxu0 0.0
      %514 = vmatpush1.msra.mxu0 0.0
      %515 = vmatprep.subr.mxu0 0.0
      %516 = vmatpush1.msra.mxu0 0.0
      %517 = vmatprep.subr.mxu0 0.0
      %518 = vmatpush1.msra.mxu0 0.0
      %519 = vmatprep.subr.mxu0 0.0
      %520 = vmatpush1.msra.mxu0 0.0
      %521 = vmatprep.subr.mxu0 0.0
      %522 = vmatpush1.msra.mxu0 0.0
      %523 = vmatprep.subr.mxu0 0.0
      %524 = vmatpush1.msra.mxu0 0.0
      %525 = vmatprep.subr.mxu0 0.0
      %526 = vmatpush1.msra.mxu0 0.0
      %527 = vmatprep.subr.mxu0 0.0
      %528 = vmatpush1.msra.mxu0 0.0
      %529 = vmatprep.subr.mxu0 0.0
      %530 = vmatpush1.msra.mxu0 0.0
      %531 = vmatprep.subr.mxu0 0.0
      %532 = vmatpush1.msra.mxu0 0.0
      %533 = vmatprep.subr.mxu0 0.0
      %534 = vmatpush1.msra.mxu0 0.0
      %535 = vmatprep.subr.mxu0 0.0
      %536 = vmatpush1.msra.mxu0 0.0
      %537 = vmatprep.subr.mxu0 0.0
      %538 = vmatpush1.msra.mxu0 0.0
      %539 = vmatprep.subr.mxu0 0.0
      %540 = vmatpush1.msra.mxu0 0.0
      %541 = vmatprep.subr.mxu0 0.0
      %542 = vmatpush1.msra.mxu0 0.0
      %543 = vmatprep.subr.mxu0 0.0
      %544 = vmatpush1.msra.mxu0 0.0
      %545 = vmatprep.subr.mxu0 0.0
      %546 = vmatpush1.msra.mxu0 0.0
      %547 = vmatprep.subr.mxu0 0.0
      %548 = vmatpush1.msra.mxu0 0.0
      %549 = vmatprep.subr.mxu0 0.0
      %550 = vmatpush1.msra.mxu0 0.0
      %551 = vmatprep.subr.mxu0 0.0
      %552 = vmatpush1.msra.mxu0 0.0
      %553 = vmatprep.subr.mxu0 0.0
      %554 = vmatpush1.msra.mxu0 0.0
      %555 = vmatprep.subr.mxu0 0.0
      %556 = vmatpush1.msra.mxu0 0.0
      %557 = vmatprep.subr.mxu0 0.0
      %558 = vmatpush1.msra.mxu0 0.0
      %559 = vmatprep.subr.mxu0 0.0
      %560 = vmatpush1.msra.mxu0 0.0
      %561 = vmatprep.mubr.f32.mxu0 0.0
      %562 = vmatmul.mubr.f32.gmra.mrb[0].mxu0 %v492
      %v563 = vpop.f32.mrb[0].mxu0
      %v564 = vadd.f32 0.0, %v563
      %v565 = vpop.f32.mrb[0].mxu0
      %566 = vdwg.mxu0
      %567 = vset.pattern.permute.xlu0 4
      %568 = vperm.xlu0 %567, %v306
      %v569 = vpop.permute.xlu0 %568
      %v571 = vmul.f32 %v564, %v569
      %572 = vset.pattern.permute.xlu0 5
      %573 = vperm.xlu0 %572, %v306
      %v574 = vpop.permute.xlu0 %573
      %v576 = vadd.f32 %v571, %v574
      %vm577 = vcmp.ge.f32.partialorder %v576, 0.0
      %v578 = vmul.f32 %v576, 0.1
      %v579 = vsel %vm577, %v576, %v578
      %v580 = vadd.f32 %v488, %v579
      %vm581 = vcmask 523264
      %582 = vst.msk [vmem:[%s305] sm:$0xff] %vm581, %v580
      %p583 = scmp.lt.s32.totalorder %s21, 1
      %s584 = scalar_select %p583, %s21, 1
      %p585 = scmp.lt.s32.totalorder %s22, 0
      %s586 = scalar_select %p585, %s22, 0
      %s587 = sadd.s32 %s586, %s584
      %s588 = smul.addr %s587, 8
      %s589 = scalar_lea.vmem %s6, %s588
      // Predicated region
      $region45: #{downsampling_block.5} parent=43 // pred_check
        %p590 = pneg %p189
      $region46: #{downsampling_block.5} parent=43 // pred_check_branch
        %592 = sbr.rel (%p590) target = $region48
      $region47: #{downsampling_block.5} parent=43 // pred_region
        _
      $region48: #{downsampling_block.5} parent=43 // pred_fallthru
        _
    $region44: #{downsampling_block.5} parent=5 // pred_fallthru
      _
    %p593 = scmp.le.s32.totalorder 2, %s12
    // Predicated region
    $region49: #{downsampling_block.5} parent=5 // pred_check
      %p594 = pneg %p593
    $region50: #{downsampling_block.5} parent=5 // pred_check_branch
      %596 = sbr.rel (%p594) target = $region52
    $region51: #{downsampling_block.5} parent=5 // pred_region
      %s597 = ssub.s32 %s12, 2
      // Predicated region
      $region53: #{downsampling_block.5} parent=51 // pred_check
        %p598 = pneg %p195
      $region54: #{downsampling_block.5} parent=51 // pred_check_branch
        %600 = sbr.rel (%p598) target = $region56
      $region55: #{downsampling_block.5} parent=51 // pred_region
        %p601 = scmp.lt.s32.totalorder %s23, 1
        %s602 = scalar_select %p601, %s23, 1
        %p603 = scmp.lt.s32.totalorder %s24, 0
        %s604 = scalar_select %p603, %s24, 0
        %s605 = sadd.s32 %s604, %s602
        %s606 = smul.addr %s605, 8
        %s607 = scalar_lea.vmem %s6, %s606
      $region56: #{downsampling_block.5} parent=51 // pred_fallthru
        _
    $region52: #{downsampling_block.5} parent=5 // pred_fallthru
      _
  $region6: #{downsampling_block.5} parent=0 // loop_footer
    %s16 = sadd.s32 1, %s12
  $region7: #{downsampling_block.5} parent=0 // loop_footer_branch
    %11 = sbr.rel target = $region3
  $region8: #{downsampling_block.5} parent=0 // loop_exit
    _

// kernel: downsampling_block.4
$region0: #{downsampling_block.4}
  #allocation0 [shape = 'u32[]', space=smem, size = 0x4, offset = 0x4, fixed_abs, tag = 'smem constant byte address 0x4 - core index']
  #allocation1 [shape = 'u32[144,128]{1,0:T(1,128)}', space=vmem, size = 0x12000, scoped, tag = 'internal scratch']
  %s0 = inlined_call_operand.vmem [shape: f32[2,4,64], index: 0, kind: input, shape index: {}]
  %s1 = inlined_call_operand.vmem [shape: f32[8,4], index: 1, kind: input, shape index: {}]
  %s2 = inlined_call_operand.vmem [shape: f32[8,8], index: 2, kind: input, shape index: {}]
  %s3 = inlined_call_operand.vmem [shape: f32[8,2], index: 3, kind: input, shape index: {}]
  %s4 = inlined_call_operand.vmem [shape: f32[2,8,2], index: 4, kind: output, shape index: {}]
  %s5 = sld [smem:[#allocation0]]
  $region53: #{downsampling_block.4} parent=0
    _
  %s7 = ssub.s32 1, %s5
  %s8 = scalar_select 0, %s7, %s5
  loop: start=0, step=1, limit=4
  $region2: #{downsampling_block.4} parent=0 // loop_pre_header
    _
  $region3: #{downsampling_block.4} parent=0 // loop_header
    %s10 = sphi 0, %s14
    %p11 = scmp.ge.s32.totalorder %s10, 4
    %s17 = sphi 0, %s29
    %s18 = sphi 0, %s25
    %s19 = sphi 0, %s17
    %s20 = sphi 0, %s18
    %s21 = sphi 0, %s19
    %s22 = sphi 0, %s20
    %s34 = sphi 0, %s36
    %s37 = sphi 0, %s34
    %s38 = sphi 0, %s37
    %s54 = sphi 0, %s38
    %s58 = sphi 0, %s58
    %s60 = sphi 0, %s58
    %s61 = sphi 0, %s60
    %s75 = sphi 0, %s61
    %s79 = sphi 0, %s79
    %s81 = sphi 0, %s79
    %s82 = sphi 0, %s81
    %s96 = sphi 0, %s82
    %s100 = sphi 0, %s100
    %s102 = sphi 0, %s100
    %s103 = sphi 0, %s102
    %s117 = sphi 0, %s103
    %s123 = sphi 0, %s125
    %s126 = sphi 0, %s123
    %s127 = sphi 0, %s126
    %s143 = sphi 0, %s127
  $region4: #{downsampling_block.4} parent=0 // loop_header_branch
    %13 = sbr.rel (%p11) target = $region8
  $region5: #{downsampling_block.4} parent=0 // loop_body
    %s15 = ssub.s32 %s10, 1
    %s16 = ssub.s32 %s10, 2
    %s23 = sadd.s32 1, %s18
    %p24 = scmp.ge.s32.totalorder %s23, 1
    %s25 = scalar_select %p24, 0, %s23
    %s26 = sadd.s32 1, %s17
    %s27 = scalar_select %p24, %s26, %s17
    %p28 = scmp.ge.s32.totalorder %s27, 2
    %s29 = scalar_select %p28, 0, %s27
    %s30 = ssub.s32 %s17, %s29
    %s31 = ssub.s32 %s18, %s25
    %s32 = sor.u32 %s30, %s31
    %p33 = scmp.eq.s32.totalorder %s32, 0
    %s35 = sadd.s32 %s34, 1
    %s36 = scalar_select %p33, %s34, %s35
    %p39 = pneg %p33
    %p40 = scmp.eq.s32.totalorder %s10, 1
    %p41 = por %p39, %p40
    %p42 = scmp.ne.s32.totalorder %s34, %s37
    %p43 = scmp.eq.s32.totalorder %s10, 0
    %p44 = por %p42, %p43
    %p45 = scmp.ne.s32.totalorder %s34, %s37
    %p46 = scmp.eq.s32.totalorder %s15, 1
    %p47 = por %p45, %p46
    %p48 = scmp.ne.s32.totalorder %s37, %s38
    %p49 = scmp.eq.s32.totalorder %s15, 0
    %p50 = por %p48, %p49
    %p51 = scmp.ne.s32.totalorder %s37, %s38
    %p52 = scmp.eq.s32.totalorder %s16, 1
    %p53 = por %p51, %p52
    %p55 = scmp.ne.s32.totalorder %s38, %s54
    %p56 = scmp.eq.s32.totalorder %s16, 0
    %p57 = por %p55, %p56
    %s59 = sadd.s32 %s58, 1
    %p62 = scmp.eq.s32.totalorder %s10, 1
    %p63 = scmp.ne.s32.totalorder %s58, %s60
    %p64 = scmp.eq.s32.totalorder %s10, 0
    %p65 = por %p63, %p64
    %p66 = scmp.ne.s32.totalorder %s58, %s60
    %p67 = scmp.eq.s32.totalorder %s15, 1
    %p68 = por %p66, %p67
    %p69 = scmp.ne.s32.totalorder %s60, %s61
    %p70 = scmp.eq.s32.totalorder %s15, 0
    %p71 = por %p69, %p70
    %p72 = scmp.ne.s32.totalorder %s60, %s61
    %p73 = scmp.eq.s32.totalorder %s16, 1
    %p74 = por %p72, %p73
    %p76 = scmp.ne.s32.totalorder %s61, %s75
    %p77 = scmp.eq.s32.totalorder %s16, 0
    %p78 = por %p76, %p77
    %s80 = sadd.s32 %s79, 1
    %p83 = scmp.eq.s32.totalorder %s10, 1
    %p84 = scmp.ne.s32.totalorder %s79, %s81
    %p85 = scmp.eq.s32.totalorder %s10, 0
    %p86 = por %p84, %p85
    %p87 = scmp.ne.s32.totalorder %s79, %s81
    %p88 = scmp.eq.s32.totalorder %s15, 1
    %p89 = por %p87, %p88
    %p90 = scmp.ne.s32.totalorder %s81, %s82
    %p91 = scmp.eq.s32.totalorder %s15, 0
    %p92 = por %p90, %p91
    %p93 = scmp.ne.s32.totalorder %s81, %s82
    %p94 = scmp.eq.s32.totalorder %s16, 1
    %p95 = por %p93, %p94
    %p97 = scmp.ne.s32.totalorder %s82, %s96
    %p98 = scmp.eq.s32.totalorder %s16, 0
    %p99 = por %p97, %p98
    %s101 = sadd.s32 %s100, 1
    %p104 = scmp.eq.s32.totalorder %s10, 1
    %p105 = scmp.ne.s32.totalorder %s100, %s102
    %p106 = scmp.eq.s32.totalorder %s10, 0
    %p107 = por %p105, %p106
    %p108 = scmp.ne.s32.totalorder %s100, %s102
    %p109 = scmp.eq.s32.totalorder %s15, 1
    %p110 = por %p108, %p109
    %p111 = scmp.ne.s32.totalorder %s102, %s103
    %p112 = scmp.eq.s32.totalorder %s15, 0
    %p113 = por %p111, %p112
    %p114 = scmp.ne.s32.totalorder %s102, %s103
    %p115 = scmp.eq.s32.totalorder %s16, 1
    %p116 = por %p114, %p115
    %p118 = scmp.ne.s32.totalorder %s103, %s117
    %p119 = scmp.eq.s32.totalorder %s16, 0
    %p120 = por %p118, %p119
    %s121 = ssub.s32 %s17, %s29
    %p122 = scmp.eq.s32.totalorder %s121, 0
    %s124 = sadd.s32 %s123, 1
    %s125 = scalar_select %p122, %s123, %s124
    %p128 = pneg %p122
    %p129 = scmp.eq.s32.totalorder %s10, 1
    %p130 = por %p128, %p129
    %p131 = scmp.ne.s32.totalorder %s123, %s126
    %p132 = scmp.eq.s32.totalorder %s10, 0
    %p133 = por %p131, %p132
    %p134 = scmp.ne.s32.totalorder %s123, %s126
    %p135 = scmp.eq.s32.totalorder %s15, 1
    %p136 = por %p134, %p135
    %p137 = scmp.ne.s32.totalorder %s126, %s127
    %p138 = scmp.eq.s32.totalorder %s15, 0
    %p139 = por %p137, %p138
    %p140 = scmp.ne.s32.totalorder %s126, %s127
    %p141 = scmp.eq.s32.totalorder %s16, 1
    %p142 = por %p140, %p141
    %p144 = scmp.ne.s32.totalorder %s127, %s143
    %p145 = scmp.eq.s32.totalorder %s16, 0
    %p146 = por %p144, %p145
    %p147 = scmp.le.s32.totalorder 1, %s10
    %p148 = scmp.lt.s32.totalorder %s10, 3
    %p149 = pnand %p147, %p148
    %p150 = pneg %p149
    // Predicated region
    $region9: #{downsampling_block.4} parent=5 // pred_check
      _
    $region10: #{downsampling_block.4} parent=5 // pred_check_branch
      %152 = sbr.rel (%p149) target = $region12
    $region11: #{downsampling_block.4} parent=5 // pred_region
      %s153 = ssub.s32 %s10, 1
      // Predicated region
      $region13: #{downsampling_block.4} parent=11 // pred_check
        %p154 = pneg %p71
      $region14: #{downsampling_block.4} parent=11 // pred_check_branch
        %156 = sbr.rel (%p154) target = $region16
      $region15: #{downsampling_block.4} parent=11 // pred_region
        _
      $region16: #{downsampling_block.4} parent=11 // pred_fallthru
        _
      // Predicated region
      $region17: #{downsampling_block.4} parent=11 // pred_check
        %p157 = pneg %p92
      $region18: #{downsampling_block.4} parent=11 // pred_check_branch
        %159 = sbr.rel (%p157) target = $region20
      $region19: #{downsampling_block.4} parent=11 // pred_region
        _
      $region20: #{downsampling_block.4} parent=11 // pred_fallthru
        _
      // Predicated region
      $region21: #{downsampling_block.4} parent=11 // pred_check
        %p160 = pneg %p113
      $region22: #{downsampling_block.4} parent=11 // pred_check_branch
        %162 = sbr.rel (%p160) target = $region24
      $region23: #{downsampling_block.4} parent=11 // pred_region
        _
      $region24: #{downsampling_block.4} parent=11 // pred_fallthru
        _
    $region12: #{downsampling_block.4} parent=5 // pred_fallthru
      _
    %p163 = scmp.lt.s32.totalorder %s10, 2
    // Predicated region
    $region25: #{downsampling_block.4} parent=5 // pred_check
      %p164 = pneg %p163
    $region26: #{downsampling_block.4} parent=5 // pred_check_branch
      %166 = sbr.rel (%p164) target = $region28
    $region27: #{downsampling_block.4} parent=5 // pred_region
      // Predicated region
      $region29: #{downsampling_block.4} parent=27 // pred_check
        %p167 = pneg %p44
      $region30: #{downsampling_block.4} parent=27 // pred_check_branch
        %169 = sbr.rel (%p167) target = $region32
      $region31: #{downsampling_block.4} parent=27 // pred_region
        %p170 = scmp.lt.s32.totalorder %s17, 1
        %s171 = scalar_select %p170, %s17, 1
        %p172 = scmp.lt.s32.totalorder %s18, 0
        %s173 = scalar_select %p172, %s18, 0
        %s174 = sadd.s32 %s173, %s171
        %s175 = smul.addr %s174, 4
        %s176 = scalar_lea.vmem %s0, %s175
      $region32: #{downsampling_block.4} parent=27 // pred_fallthru
        _
    $region28: #{downsampling_block.4} parent=5 // pred_fallthru
      _
    %p177 = scmp.le.s32.totalorder 1, %s10
    %p178 = scmp.lt.s32.totalorder %s10, 3
    %p179 = pnand %p177, %p178
    %p180 = pneg %p179
    // Predicated region
    $region33: #{downsampling_block.4} parent=5 // pred_check
      _
    $region34: #{downsampling_block.4} parent=5 // pred_check_branch
      %182 = sbr.rel (%p179) target = $region36
    $region35: #{downsampling_block.4} parent=5 // pred_region
      %s183 = ssub.s32 %s10, 1
      %p184 = scmp.lt.s32.totalorder %s19, 1
      %s185 = scalar_select %p184, %s19, 1
      %p186 = scmp.lt.s32.totalorder %s20, 0
      %s187 = scalar_select %p186, %s20, 0
      %s188 = sadd.s32 %s187, %s185
      %s189 = smul.addr %s188, 4
      %s190 = scalar_lea.vmem %s0, %s189
      %p191 = pneg %p50
      %p192 = pneg %p47
      %p193 = pneg %p71
      %p194 = pneg %p68
      %p195 = pneg %p92
      %p196 = pneg %p89
      %p197 = pneg %p113
      %p198 = pneg %p110
      %p199 = pneg %p139
      %p200 = pneg %p136
      %p201 = scmp.lt.s32.totalorder %s19, 1
      %s202 = scalar_select %p201, %s19, 1
      %s203 = smul.addr %s202, 8
      %s204 = scalar_lea.vmem %s4, %s203
      %p205 = scmp.lt.s32.totalorder %s19, 1
      %s206 = scalar_select %p205, %s19, 1
      %p207 = scmp.lt.s32.totalorder %s20, 0
      %s208 = scalar_select %p207, %s20, 0
      %s209 = sadd.s32 %s208, %s206
      %s210 = smul.addr %s209, 4
      %s211 = scalar_lea.vmem %s0, %s210
      %p212 = scmp.lt.s32.totalorder %s19, 1
      %s213 = scalar_select %p212, %s19, 1
      %s214 = smul.addr %s213, 8
      %s215 = scalar_lea.vmem %s4, %s214
      %p216 = scmp.eq.s32.totalorder %s20, 0
      // Predicated region
      $region37: #{downsampling_block.4} parent=35 // pred_check
        %p217 = pneg %p216
      $region38: #{downsampling_block.4} parent=35 // pred_check_branch
        %219 = sbr.rel (%p217) target = $region40
      $region39: #{downsampling_block.4} parent=35 // pred_region
        %vm220 = vcmask 15360
        %221 = vst.msk [vmem:[%s215] sm:$0xff] %vm220, 0.0
      $region40: #{downsampling_block.4} parent=35 // pred_fallthru
        _
      %v222 = vld [vmem:[%s1] sm:$0xff]
      %v223 = vld [vmem:[%s211] sm:$0xf]
      %vm224 = vcmask 31744
      %v226 = vsel %vm224, %v222, 0
      %vm228 = vcmask 1043456
      %v230 = vsel %vm228, %v223, 0
      %232 = vmatprep.subr.mxu0 0.0
      %233 = vmatpush1.msra.mxu0 %v230
      %234 = vmatprep.subr.mxu0 0.0
      %235 = vmatpush1.msra.mxu0 0.0
      %236 = vmatprep.subr.mxu0 0.0
      %237 = vmatpush1.msra.mxu0 0.0
      %238 = vmatprep.subr.mxu0 0.0
      %239 = vmatpush1.msra.mxu0 0.0
      %240 = vmatprep.subr.mxu0 0.0
      %241 = vmatpush1.msra.mxu0 0.0
      %242 = vmatprep.subr.mxu0 0.0
      %243 = vmatpush1.msra.mxu0 0.0
      %244 = vmatprep.subr.mxu0 0.0
      %245 = vmatpush1.msra.mxu0 0.0
      %246 = vmatprep.subr.mxu0 0.0
      %247 = vmatpush1.msra.mxu0 0.0
      %248 = vmatprep.subr.mxu0 0.0
      %249 = vmatpush1.msra.mxu0 0.0
      %250 = vmatprep.subr.mxu0 0.0
      %251 = vmatpush1.msra.mxu0 0.0
      %252 = vmatprep.subr.mxu0 0.0
      %253 = vmatpush1.msra.mxu0 0.0
      %254 = vmatprep.subr.mxu0 0.0
      %255 = vmatpush1.msra.mxu0 0.0
      %256 = vmatprep.subr.mxu0 0.0
      %257 = vmatpush1.msra.mxu0 0.0
      %258 = vmatprep.subr.mxu0 0.0
      %259 = vmatpush1.msra.mxu0 0.0
      %260 = vmatprep.subr.mxu0 0.0
      %261 = vmatpush1.msra.mxu0 0.0
      %262 = vmatprep.subr.mxu0 0.0
      %263 = vmatpush1.msra.mxu0 0.0
      %264 = vmatprep.subr.mxu0 0.0
      %265 = vmatpush1.msra.mxu0 0.0
      %266 = vmatprep.subr.mxu0 0.0
      %267 = vmatpush1.msra.mxu0 0.0
      %268 = vmatprep.subr.mxu0 0.0
      %269 = vmatpush1.msra.mxu0 0.0
      %270 = vmatprep.subr.mxu0 0.0
      %271 = vmatpush1.msra.mxu0 0.0
      %272 = vmatprep.subr.mxu0 0.0
      %273 = vmatpush1.msra.mxu0 0.0
      %274 = vmatprep.subr.mxu0 0.0
      %275 = vmatpush1.msra.mxu0 0.0
      %276 = vmatprep.subr.mxu0 0.0
      %277 = vmatpush1.msra.mxu0 0.0
      %278 = vmatprep.subr.mxu0 0.0
      %279 = vmatpush1.msra.mxu0 0.0
      %280 = vmatprep.subr.mxu0 0.0
      %281 = vmatpush1.msra.mxu0 0.0
      %282 = vmatprep.subr.mxu0 0.0
      %283 = vmatpush1.msra.mxu0 0.0
      %284 = vmatprep.subr.mxu0 0.0
      %285 = vmatpush1.msra.mxu0 0.0
      %286 = vmatprep.subr.mxu0 0.0
      %287 = vmatpush1.msra.mxu0 0.0
      %288 = vmatprep.subr.mxu0 0.0
      %289 = vmatpush1.msra.mxu0 0.0
      %290 = vmatprep.subr.mxu0 0.0
      %291 = vmatpush1.msra.mxu0 0.0
      %292 = vmatprep.subr.mxu0 0.0
      %293 = vmatpush1.msra.mxu0 0.0
      %294 = vmatprep.subr.mxu0 0.0
      %295 = vmatpush1.msra.mxu0 0.0
      %296 = vmatprep.mubr.f32.mxu0 0.0
      %297 = vmatmul.mubr.f32.gmra.mrb[0].mxu0 %v226
      %v298 = vpop.f32.mrb[0].mxu0
      %v299 = vadd.f32 0.0, %v298
      %v300 = vpop.f32.mrb[0].mxu0
      %301 = vdwg.mxu0
      %v302 = vld [vmem:[%s3] sm:$0xff]
      %304 = vset.pattern.permute.xlu0 0
      %305 = vperm.xlu0 %304, %v302
      %v306 = vpop.permute.xlu0 %305
      %v308 = vmul.f32 %v299, %v306
      %309 = vset.pattern.permute.xlu0 1
      %310 = vperm.xlu0 %309, %v302
      %v311 = vpop.permute.xlu0 %310
      %v313 = vadd.f32 %v308, %v311
      %vm314 = vcmp.ge.f32.partialorder %v313, 0.0
      %v315 = vmul.f32 %v313, 0.1
      %v316 = vsel %vm314, %v313, %v315
      %v317 = vld [vmem:[%s2] sm:$0xff]
      %vm318 = vcmask 64512
      %v320 = vsel %vm318, %v317, 0
      %322 = vmatprep.subr.mxu0 0.0
      %323 = vmatpush1.msra.mxu0 %v316
      %324 = vmatprep.subr.mxu0 0.0
      %325 = vmatpush1.msra.mxu0 0.0
      %326 = vmatprep.subr.mxu0 0.0
      %327 = vmatpush1.msra.mxu0 0.0
      %328 = vmatprep.subr.mxu0 0.0
      %329 = vmatpush1.msra.mxu0 0.0
      %330 = vmatprep.subr.mxu0 0.0
      %331 = vmatpush1.msra.mxu0 0.0
      %332 = vmatprep.subr.mxu0 0.0
      %333 = vmatpush1.msra.mxu0 0.0
      %334 = vmatprep.subr.mxu0 0.0
      %335 = vmatpush1.msra.mxu0 0.0
      %336 = vmatprep.subr.mxu0 0.0
      %337 = vmatpush1.msra.mxu0 0.0
      %338 = vmatprep.subr.mxu0 0.0
      %339 = vmatpush1.msra.mxu0 0.0
      %340 = vmatprep.subr.mxu0 0.0
      %341 = vmatpush1.msra.mxu0 0.0
      %342 = vmatprep.subr.mxu0 0.0
      %343 = vmatpush1.msra.mxu0 0.0
      %344 = vmatprep.subr.mxu0 0.0
      %345 = vmatpush1.msra.mxu0 0.0
      %346 = vmatprep.subr.mxu0 0.0
      %347 = vmatpush1.msra.mxu0 0.0
      %348 = vmatprep.subr.mxu0 0.0
      %349 = vmatpush1.msra.mxu0 0.0
      %350 = vmatprep.subr.mxu0 0.0
      %351 = vmatpush1.msra.mxu0 0.0
      %352 = vmatprep.subr.mxu0 0.0
      %353 = vmatpush1.msra.mxu0 0.0
      %354 = vmatprep.subr.mxu0 0.0
      %355 = vmatpush1.msra.mxu0 0.0
      %356 = vmatprep.subr.mxu0 0.0
      %357 = vmatpush1.msra.mxu0 0.0
      %358 = vmatprep.subr.mxu0 0.0
      %359 = vmatpush1.msra.mxu0 0.0
      %360 = vmatprep.subr.mxu0 0.0
      %361 = vmatpush1.msra.mxu0 0.0
      %362 = vmatprep.subr.mxu0 0.0
      %363 = vmatpush1.msra.mxu0 0.0
      %364 = vmatprep.subr.mxu0 0.0
      %365 = vmatpush1.msra.mxu0 0.0
      %366 = vmatprep.subr.mxu0 0.0
      %367 = vmatpush1.msra.mxu0 0.0
      %368 = vmatprep.subr.mxu0 0.0
      %369 = vmatpush1.msra.mxu0 0.0
      %370 = vmatprep.subr.mxu0 0.0
      %371 = vmatpush1.msra.mxu0 0.0
      %372 = vmatprep.subr.mxu0 0.0
      %373 = vmatpush1.msra.mxu0 0.0
      %374 = vmatprep.subr.mxu0 0.0
      %375 = vmatpush1.msra.mxu0 0.0
      %376 = vmatprep.subr.mxu0 0.0
      %377 = vmatpush1.msra.mxu0 0.0
      %378 = vmatprep.subr.mxu0 0.0
      %379 = vmatpush1.msra.mxu0 0.0
      %380 = vmatprep.subr.mxu0 0.0
      %381 = vmatpush1.msra.mxu0 0.0
      %382 = vmatprep.subr.mxu0 0.0
      %383 = vmatpush1.msra.mxu0 0.0
      %384 = vmatprep.subr.mxu0 0.0
      %385 = vmatpush1.msra.mxu0 0.0
      %386 = vmatprep.mubr.f32.mxu0 0.0
      %387 = vmatmul.mubr.f32.gmra.mrb[0].mxu0 %v320
      %v388 = vpop.f32.mrb[0].mxu0
      %v389 = vadd.f32 0.0, %v388
      %v390 = vpop.f32.mrb[0].mxu0
      %391 = vdwg.mxu0
      %vm392 = vcmask 523264
      %v393 = vsel %vm392, %v389, 0.0
      %394 = vadd.xlane.f32.xlu0 %v393
      %v395 = vpop.xlane.xlu0 %394
      %v396 = vmul.f32 %v389, %v389
      %v397 = vsel %vm392, %v396, 0.0
      %398 = vadd.xlane.f32.xlu0 %v397
      %v399 = vpop.xlane.xlu0 %398
      %v400 = vld [vmem:[%s215] sm:$0xff]
      %vm401 = vcmask 7168
      %v402 = vsel %vm401, %v395, %v399
      %v403 = vadd.f32 %v400, %v402
      %vm404 = vcmask 15360
      %405 = vst.msk [vmem:[%s215] sm:$0xff] %vm404, %v403
      %p406 = scmp.lt.s32.totalorder %s19, 1
      %s407 = scalar_select %p406, %s19, 1
      %s408 = smul.addr %s407, 8
      %s409 = scalar_lea.vmem %s4, %s408
      // Predicated region
      $region41: #{downsampling_block.4} parent=35 // pred_check
        %p410 = pneg %p136
      $region42: #{downsampling_block.4} parent=35 // pred_check_branch
        %412 = sbr.rel (%p410) target = $region44
      $region43: #{downsampling_block.4} parent=35 // pred_region
        _
      $region44: #{downsampling_block.4} parent=35 // pred_fallthru
        _
    $region36: #{downsampling_block.4} parent=5 // pred_fallthru
      _
    %p413 = scmp.le.s32.totalorder 2, %s10
    // Predicated region
    $region45: #{downsampling_block.4} parent=5 // pred_check
      %p414 = pneg %p413
    $region46: #{downsampling_block.4} parent=5 // pred_check_branch
      %416 = sbr.rel (%p414) target = $region48
    $region47: #{downsampling_block.4} parent=5 // pred_region
      %s417 = ssub.s32 %s10, 2
      // Predicated region
      $region49: #{downsampling_block.4} parent=47 // pred_check
        %p418 = pneg %p142
      $region50: #{downsampling_block.4} parent=47 // pred_check_branch
        %420 = sbr.rel (%p418) target = $region52
      $region51: #{downsampling_block.4} parent=47 // pred_region
        %p421 = scmp.lt.s32.totalorder %s21, 1
        %s422 = scalar_select %p421, %s21, 1
        %s423 = smul.addr %s422, 8
        %s424 = scalar_lea.vmem %s4, %s423
      $region52: #{downsampling_block.4} parent=47 // pred_fallthru
        _
    $region48: #{downsampling_block.4} parent=5 // pred_fallthru
      _
  $region6: #{downsampling_block.4} parent=0 // loop_footer
    %s14 = sadd.s32 1, %s10
  $region7: #{downsampling_block.4} parent=0 // loop_footer_branch
    %9 = sbr.rel target = $region3
  $region8: #{downsampling_block.4} parent=0 // loop_exit
    _

// kernel: downsampling_block.3
$region0: #{downsampling_block.3}
  #allocation0 [shape = 'u32[]', space=smem, size = 0x4, offset = 0x4, fixed_abs, tag = 'smem constant byte address 0x4 - core index']
  #allocation1 [shape = 'u32[144,128]{1,0:T(1,128)}', space=vmem, size = 0x12000, scoped, tag = 'internal scratch']
  %s0 = inlined_call_operand.vmem [shape: f32[2,4,64], index: 0, kind: input, shape index: {}]
  %s1 = inlined_call_operand.vmem [shape: f32[2,4,64], index: 1, kind: input, shape index: {}]
  %s2 = inlined_call_operand.vmem [shape: f32[8,4], index: 2, kind: input, shape index: {}]
  %s3 = inlined_call_operand.vmem [shape: f32[8,4], index: 3, kind: input, shape index: {}]
  %s4 = inlined_call_operand.vmem [shape: f32[2,8,4], index: 4, kind: output, shape index: {}]
  %s5 = sld [smem:[#allocation0]]
  $region53: #{downsampling_block.3} parent=0
    _
  %s7 = ssub.s32 1, %s5
  %s8 = scalar_select 0, %s7, %s5
  loop: start=0, step=1, limit=4
  $region2: #{downsampling_block.3} parent=0 // loop_pre_header
    _
  $region3: #{downsampling_block.3} parent=0 // loop_header
    %s10 = sphi 0, %s14
    %p11 = scmp.ge.s32.totalorder %s10, 4
    %s17 = sphi 0, %s29
    %s18 = sphi 0, %s25
    %s19 = sphi 0, %s17
    %s20 = sphi 0, %s18
    %s21 = sphi 0, %s19
    %s22 = sphi 0, %s20
    %s34 = sphi 0, %s36
    %s37 = sphi 0, %s34
    %s38 = sphi 0, %s37
    %s54 = sphi 0, %s38
    %s62 = sphi 0, %s64
    %s65 = sphi 0, %s62
    %s66 = sphi 0, %s65
    %s82 = sphi 0, %s66
    %s86 = sphi 0, %s86
    %s88 = sphi 0, %s86
    %s89 = sphi 0, %s88
    %s103 = sphi 0, %s89
    %s107 = sphi 0, %s107
    %s109 = sphi 0, %s107
    %s110 = sphi 0, %s109
    %s124 = sphi 0, %s110
    %s130 = sphi 0, %s132
    %s133 = sphi 0, %s130
    %s134 = sphi 0, %s133
    %s150 = sphi 0, %s134
  $region4: #{downsampling_block.3} parent=0 // loop_header_branch
    %13 = sbr.rel (%p11) target = $region8
  $region5: #{downsampling_block.3} parent=0 // loop_body
    %s15 = ssub.s32 %s10, 1
    %s16 = ssub.s32 %s10, 2
    %s23 = sadd.s32 1, %s18
    %p24 = scmp.ge.s32.totalorder %s23, 1
    %s25 = scalar_select %p24, 0, %s23
    %s26 = sadd.s32 1, %s17
    %s27 = scalar_select %p24, %s26, %s17
    %p28 = scmp.ge.s32.totalorder %s27, 2
    %s29 = scalar_select %p28, 0, %s27
    %s30 = ssub.s32 %s17, %s29
    %s31 = ssub.s32 %s18, %s25
    %s32 = sor.u32 %s30, %s31
    %p33 = scmp.eq.s32.totalorder %s32, 0
    %s35 = sadd.s32 %s34, 1
    %s36 = scalar_select %p33, %s34, %s35
    %p39 = pneg %p33
    %p40 = scmp.eq.s32.totalorder %s10, 1
    %p41 = por %p39, %p40
    %p42 = scmp.ne.s32.totalorder %s34, %s37
    %p43 = scmp.eq.s32.totalorder %s10, 0
    %p44 = por %p42, %p43
    %p45 = scmp.ne.s32.totalorder %s34, %s37
    %p46 = scmp.eq.s32.totalorder %s15, 1
    %p47 = por %p45, %p46
    %p48 = scmp.ne.s32.totalorder %s37, %s38
    %p49 = scmp.eq.s32.totalorder %s15, 0
    %p50 = por %p48, %p49
    %p51 = scmp.ne.s32.totalorder %s37, %s38
    %p52 = scmp.eq.s32.totalorder %s16, 1
    %p53 = por %p51, %p52
    %p55 = scmp.ne.s32.totalorder %s38, %s54
    %p56 = scmp.eq.s32.totalorder %s16, 0
    %p57 = por %p55, %p56
    %s58 = ssub.s32 %s17, %s29
    %s59 = ssub.s32 %s18, %s25
    %s60 = sor.u32 %s58, %s59
    %p61 = scmp.eq.s32.totalorder %s60, 0
    %s63 = sadd.s32 %s62, 1
    %s64 = scalar_select %p61, %s62, %s63
    %p67 = pneg %p61
    %p68 = scmp.eq.s32.totalorder %s10, 1
    %p69 = por %p67, %p68
    %p70 = scmp.ne.s32.totalorder %s62, %s65
    %p71 = scmp.eq.s32.totalorder %s10, 0
    %p72 = por %p70, %p71
    %p73 = scmp.ne.s32.totalorder %s62, %s65
    %p74 = scmp.eq.s32.totalorder %s15, 1
    %p75 = por %p73, %p74
    %p76 = scmp.ne.s32.totalorder %s65, %s66
    %p77 = scmp.eq.s32.totalorder %s15, 0
    %p78 = por %p76, %p77
    %p79 = scmp.ne.s32.totalorder %s65, %s66
    %p80 = scmp.eq.s32.totalorder %s16, 1
    %p81 = por %p79, %p80
    %p83 = scmp.ne.s32.totalorder %s66, %s82
    %p84 = scmp.eq.s32.totalorder %s16, 0
    %p85 = por %p83, %p84
    %s87 = sadd.s32 %s86, 1
    %p90 = scmp.eq.s32.totalorder %s10, 1
    %p91 = scmp.ne.s32.totalorder %s86, %s88
    %p92 = scmp.eq.s32.totalorder %s10, 0
    %p93 = por %p91, %p92
    %p94 = scmp.ne.s32.totalorder %s86, %s88
    %p95 = scmp.eq.s32.totalorder %s15, 1
    %p96 = por %p94, %p95
    %p97 = scmp.ne.s32.totalorder %s88, %s89
    %p98 = scmp.eq.s32.totalorder %s15, 0
    %p99 = por %p97, %p98
    %p100 = scmp.ne.s32.totalorder %s88, %s89
    %p101 = scmp.eq.s32.totalorder %s16, 1
    %p102 = por %p100, %p101
    %p104 = scmp.ne.s32.totalorder %s89, %s103
    %p105 = scmp.eq.s32.totalorder %s16, 0
    %p106 = por %p104, %p105
    %s108 = sadd.s32 %s107, 1
    %p111 = scmp.eq.s32.totalorder %s10, 1
    %p112 = scmp.ne.s32.totalorder %s107, %s109
    %p113 = scmp.eq.s32.totalorder %s10, 0
    %p114 = por %p112, %p113
    %p115 = scmp.ne.s32.totalorder %s107, %s109
    %p116 = scmp.eq.s32.totalorder %s15, 1
    %p117 = por %p115, %p116
    %p118 = scmp.ne.s32.totalorder %s109, %s110
    %p119 = scmp.eq.s32.totalorder %s15, 0
    %p120 = por %p118, %p119
    %p121 = scmp.ne.s32.totalorder %s109, %s110
    %p122 = scmp.eq.s32.totalorder %s16, 1
    %p123 = por %p121, %p122
    %p125 = scmp.ne.s32.totalorder %s110, %s124
    %p126 = scmp.eq.s32.totalorder %s16, 0
    %p127 = por %p125, %p126
    %s128 = ssub.s32 %s17, %s29
    %p129 = scmp.eq.s32.totalorder %s128, 0
    %s131 = sadd.s32 %s130, 1
    %s132 = scalar_select %p129, %s130, %s131
    %p135 = pneg %p129
    %p136 = scmp.eq.s32.totalorder %s10, 1
    %p137 = por %p135, %p136
    %p138 = scmp.ne.s32.totalorder %s130, %s133
    %p139 = scmp.eq.s32.totalorder %s10, 0
    %p140 = por %p138, %p139
    %p141 = scmp.ne.s32.totalorder %s130, %s133
    %p142 = scmp.eq.s32.totalorder %s15, 1
    %p143 = por %p141, %p142
    %p144 = scmp.ne.s32.totalorder %s133, %s134
    %p145 = scmp.eq.s32.totalorder %s15, 0
    %p146 = por %p144, %p145
    %p147 = scmp.ne.s32.totalorder %s133, %s134
    %p148 = scmp.eq.s32.totalorder %s16, 1
    %p149 = por %p147, %p148
    %p151 = scmp.ne.s32.totalorder %s134, %s150
    %p152 = scmp.eq.s32.totalorder %s16, 0
    %p153 = por %p151, %p152
    %p154 = scmp.le.s32.totalorder 1, %s10
    %p155 = scmp.lt.s32.totalorder %s10, 3
    %p156 = pnand %p154, %p155
    %p157 = pneg %p156
    // Predicated region
    $region9: #{downsampling_block.3} parent=5 // pred_check
      _
    $region10: #{downsampling_block.3} parent=5 // pred_check_branch
      %159 = sbr.rel (%p156) target = $region12
    $region11: #{downsampling_block.3} parent=5 // pred_region
      %s160 = ssub.s32 %s10, 1
      // Predicated region
      $region13: #{downsampling_block.3} parent=11 // pred_check
        %p161 = pneg %p99
      $region14: #{downsampling_block.3} parent=11 // pred_check_branch
        %163 = sbr.rel (%p161) target = $region16
      $region15: #{downsampling_block.3} parent=11 // pred_region
        _
      $region16: #{downsampling_block.3} parent=11 // pred_fallthru
        _
      // Predicated region
      $region17: #{downsampling_block.3} parent=11 // pred_check
        %p164 = pneg %p120
      $region18: #{downsampling_block.3} parent=11 // pred_check_branch
        %166 = sbr.rel (%p164) target = $region20
      $region19: #{downsampling_block.3} parent=11 // pred_region
        _
      $region20: #{downsampling_block.3} parent=11 // pred_fallthru
        _
    $region12: #{downsampling_block.3} parent=5 // pred_fallthru
      _
    %p167 = scmp.lt.s32.totalorder %s10, 2
    // Predicated region
    $region21: #{downsampling_block.3} parent=5 // pred_check
      %p168 = pneg %p167
    $region22: #{downsampling_block.3} parent=5 // pred_check_branch
      %170 = sbr.rel (%p168) target = $region24
    $region23: #{downsampling_block.3} parent=5 // pred_region
      // Predicated region
      $region25: #{downsampling_block.3} parent=23 // pred_check
        %p171 = pneg %p44
      $region26: #{downsampling_block.3} parent=23 // pred_check_branch
        %173 = sbr.rel (%p171) target = $region28
      $region27: #{downsampling_block.3} parent=23 // pred_region
        %p174 = scmp.lt.s32.totalorder %s17, 1
        %s175 = scalar_select %p174, %s17, 1
        %p176 = scmp.lt.s32.totalorder %s18, 0
        %s177 = scalar_select %p176, %s18, 0
        %s178 = sadd.s32 %s177, %s175
        %s179 = smul.addr %s178, 4
        %s180 = scalar_lea.vmem %s0, %s179
      $region28: #{downsampling_block.3} parent=23 // pred_fallthru
        _
      // Predicated region
      $region29: #{downsampling_block.3} parent=23 // pred_check
        %p181 = pneg %p72
      $region30: #{downsampling_block.3} parent=23 // pred_check_branch
        %183 = sbr.rel (%p181) target = $region32
      $region31: #{downsampling_block.3} parent=23 // pred_region
        %p184 = scmp.lt.s32.totalorder %s17, 1
        %s185 = scalar_select %p184, %s17, 1
        %p186 = scmp.lt.s32.totalorder %s18, 0
        %s187 = scalar_select %p186, %s18, 0
        %s188 = sadd.s32 %s187, %s185
        %s189 = smul.addr %s188, 4
        %s190 = scalar_lea.vmem %s1, %s189
      $region32: #{downsampling_block.3} parent=23 // pred_fallthru
        _
    $region24: #{downsampling_block.3} parent=5 // pred_fallthru
      _
    %p191 = scmp.le.s32.totalorder 1, %s10
    %p192 = scmp.lt.s32.totalorder %s10, 3
    %p193 = pnand %p191, %p192
    %p194 = pneg %p193
    // Predicated region
    $region33: #{downsampling_block.3} parent=5 // pred_check
      _
    $region34: #{downsampling_block.3} parent=5 // pred_check_branch
      %196 = sbr.rel (%p193) target = $region36
    $region35: #{downsampling_block.3} parent=5 // pred_region
      %s197 = ssub.s32 %s10, 1
      %p198 = scmp.lt.s32.totalorder %s19, 1
      %s199 = scalar_select %p198, %s19, 1
      %p200 = scmp.lt.s32.totalorder %s20, 0
      %s201 = scalar_select %p200, %s20, 0
      %s202 = sadd.s32 %s201, %s199
      %s203 = smul.addr %s202, 4
      %s204 = scalar_lea.vmem %s0, %s203
      %p205 = pneg %p50
      %p206 = pneg %p47
      %p207 = scmp.lt.s32.totalorder %s19, 1
      %s208 = scalar_select %p207, %s19, 1
      %p209 = scmp.lt.s32.totalorder %s20, 0
      %s210 = scalar_select %p209, %s20, 0
      %s211 = sadd.s32 %s210, %s208
      %s212 = smul.addr %s211, 4
      %s213 = scalar_lea.vmem %s1, %s212
      %p214 = pneg %p78
      %p215 = pneg %p75
      %p216 = pneg %p99
      %p217 = pneg %p96
      %p218 = pneg %p120
      %p219 = pneg %p117
      %p220 = pneg %p146
      %p221 = pneg %p143
      %p222 = scmp.lt.s32.totalorder %s19, 1
      %s223 = scalar_select %p222, %s19, 1
      %s224 = smul.addr %s223, 8
      %s225 = scalar_lea.vmem %s4, %s224
      %p226 = scmp.lt.s32.totalorder %s19, 1
      %s227 = scalar_select %p226, %s19, 1
      %p228 = scmp.lt.s32.totalorder %s20, 0
      %s229 = scalar_select %p228, %s20, 0
      %s230 = sadd.s32 %s229, %s227
      %s231 = smul.addr %s230, 4
      %s232 = scalar_lea.vmem %s0, %s231
      %p233 = scmp.lt.s32.totalorder %s19, 1
      %s234 = scalar_select %p233, %s19, 1
      %p235 = scmp.lt.s32.totalorder %s20, 0
      %s236 = scalar_select %p235, %s20, 0
      %s237 = sadd.s32 %s236, %s234
      %s238 = smul.addr %s237, 4
      %s239 = scalar_lea.vmem %s1, %s238
      %p240 = scmp.lt.s32.totalorder %s19, 1
      %s241 = scalar_select %p240, %s19, 1
      %s242 = smul.addr %s241, 8
      %s243 = scalar_lea.vmem %s4, %s242
      %p244 = scmp.eq.s32.totalorder %s20, 0
      // Predicated region
      $region37: #{downsampling_block.3} parent=35 // pred_check
        %p245 = pneg %p244
      $region38: #{downsampling_block.3} parent=35 // pred_check_branch
        %247 = sbr.rel (%p245) target = $region40
      $region39: #{downsampling_block.3} parent=35 // pred_region
        %vm248 = vcmask 31744
        %249 = vst.msk [vmem:[%s243] sm:$0xff] %vm248, 0.0
      $region40: #{downsampling_block.3} parent=35 // pred_fallthru
        _
      %v250 = vld [vmem:[%s2] sm:$0xff]
      %v251 = vld [vmem:[%s232] sm:$0xf]
      %vm252 = vcmask 31744
      %v254 = vsel %vm252, %v250, 0
      %vm256 = vcmask 1043456
      %v258 = vsel %vm256, %v251, 0
      %260 = vmatprep.subr.mxu0 0.0
      %261 = vmatpush1.msra.mxu0 %v258
      %262 = vmatprep.subr.mxu0 0.0
      %263 = vmatpush1.msra.mxu0 0.0
      %264 = vmatprep.subr.mxu0 0.0
      %265 = vmatpush1.msra.mxu0 0.0
      %266 = vmatprep.subr.mxu0 0.0
      %267 = vmatpush1.msra.mxu0 0.0
      %268 = vmatprep.subr.mxu0 0.0
      %269 = vmatpush1.msra.mxu0 0.0
      %270 = vmatprep.subr.mxu0 0.0
      %271 = vmatpush1.msra.mxu0 0.0
      %272 = vmatprep.subr.mxu0 0.0
      %273 = vmatpush1.msra.mxu0 0.0
      %274 = vmatprep.subr.mxu0 0.0
      %275 = vmatpush1.msra.mxu0 0.0
      %276 = vmatprep.subr.mxu0 0.0
      %277 = vmatpush1.msra.mxu0 0.0
      %278 = vmatprep.subr.mxu0 0.0
      %279 = vmatpush1.msra.mxu0 0.0
      %280 = vmatprep.subr.mxu0 0.0
      %281 = vmatpush1.msra.mxu0 0.0
      %282 = vmatprep.subr.mxu0 0.0
      %283 = vmatpush1.msra.mxu0 0.0
      %284 = vmatprep.subr.mxu0 0.0
      %285 = vmatpush1.msra.mxu0 0.0
      %286 = vmatprep.subr.mxu0 0.0
      %287 = vmatpush1.msra.mxu0 0.0
      %288 = vmatprep.subr.mxu0 0.0
      %289 = vmatpush1.msra.mxu0 0.0
      %290 = vmatprep.subr.mxu0 0.0
      %291 = vmatpush1.msra.mxu0 0.0
      %292 = vmatprep.subr.mxu0 0.0
      %293 = vmatpush1.msra.mxu0 0.0
      %294 = vmatprep.subr.mxu0 0.0
      %295 = vmatpush1.msra.mxu0 0.0
      %296 = vmatprep.subr.mxu0 0.0
      %297 = vmatpush1.msra.mxu0 0.0
      %298 = vmatprep.subr.mxu0 0.0
      %299 = vmatpush1.msra.mxu0 0.0
      %300 = vmatprep.subr.mxu0 0.0
      %301 = vmatpush1.msra.mxu0 0.0
      %302 = vmatprep.subr.mxu0 0.0
      %303 = vmatpush1.msra.mxu0 0.0
      %304 = vmatprep.subr.mxu0 0.0
      %305 = vmatpush1.msra.mxu0 0.0
      %306 = vmatprep.subr.mxu0 0.0
      %307 = vmatpush1.msra.mxu0 0.0
      %308 = vmatprep.subr.mxu0 0.0
      %309 = vmatpush1.msra.mxu0 0.0
      %310 = vmatprep.subr.mxu0 0.0
      %311 = vmatpush1.msra.mxu0 0.0
      %312 = vmatprep.subr.mxu0 0.0
      %313 = vmatpush1.msra.mxu0 0.0
      %314 = vmatprep.subr.mxu0 0.0
      %315 = vmatpush1.msra.mxu0 0.0
      %316 = vmatprep.subr.mxu0 0.0
      %317 = vmatpush1.msra.mxu0 0.0
      %318 = vmatprep.subr.mxu0 0.0
      %319 = vmatpush1.msra.mxu0 0.0
      %320 = vmatprep.subr.mxu0 0.0
      %321 = vmatpush1.msra.mxu0 0.0
      %322 = vmatprep.subr.mxu0 0.0
      %323 = vmatpush1.msra.mxu0 0.0
      %324 = vmatprep.mubr.f32.mxu0 0.0
      %325 = vmatmul.mubr.f32.gmra.mrb[0].mxu0 %v254
      %v326 = vpop.f32.mrb[0].mxu0
      %v327 = vadd.f32 0.0, %v326
      %v328 = vpop.f32.mrb[0].mxu0
      %329 = vdwg.mxu0
      %v330 = vld [vmem:[%s3] sm:$0xff]
      %v331 = vld [vmem:[%s239] sm:$0xf]
      %v333 = vsel %vm252, %v330, 0
      %v336 = vsel %vm256, %v331, 0
      %338 = vmatprep.subr.mxu0 0.0
      %339 = vmatpush1.msra.mxu0 %v336
      %340 = vmatprep.subr.mxu0 0.0
      %341 = vmatpush1.msra.mxu0 0.0
      %342 = vmatprep.subr.mxu0 0.0
      %343 = vmatpush1.msra.mxu0 0.0
      %344 = vmatprep.subr.mxu0 0.0
      %345 = vmatpush1.msra.mxu0 0.0
      %346 = vmatprep.subr.mxu0 0.0
      %347 = vmatpush1.msra.mxu0 0.0
      %348 = vmatprep.subr.mxu0 0.0
      %349 = vmatpush1.msra.mxu0 0.0
      %350 = vmatprep.subr.mxu0 0.0
      %351 = vmatpush1.msra.mxu0 0.0
      %352 = vmatprep.subr.mxu0 0.0
      %353 = vmatpush1.msra.mxu0 0.0
      %354 = vmatprep.subr.mxu0 0.0
      %355 = vmatpush1.msra.mxu0 0.0
      %356 = vmatprep.subr.mxu0 0.0
      %357 = vmatpush1.msra.mxu0 0.0
      %358 = vmatprep.subr.mxu0 0.0
      %359 = vmatpush1.msra.mxu0 0.0
      %360 = vmatprep.subr.mxu0 0.0
      %361 = vmatpush1.msra.mxu0 0.0
      %362 = vmatprep.subr.mxu0 0.0
      %363 = vmatpush1.msra.mxu0 0.0
      %364 = vmatprep.subr.mxu0 0.0
      %365 = vmatpush1.msra.mxu0 0.0
      %366 = vmatprep.subr.mxu0 0.0
      %367 = vmatpush1.msra.mxu0 0.0
      %368 = vmatprep.subr.mxu0 0.0
      %369 = vmatpush1.msra.mxu0 0.0
      %370 = vmatprep.subr.mxu0 0.0
      %371 = vmatpush1.msra.mxu0 0.0
      %372 = vmatprep.subr.mxu0 0.0
      %373 = vmatpush1.msra.mxu0 0.0
      %374 = vmatprep.subr.mxu0 0.0
      %375 = vmatpush1.msra.mxu0 0.0
      %376 = vmatprep.subr.mxu0 0.0
      %377 = vmatpush1.msra.mxu0 0.0
      %378 = vmatprep.subr.mxu0 0.0
      %379 = vmatpush1.msra.mxu0 0.0
      %380 = vmatprep.subr.mxu0 0.0
      %381 = vmatpush1.msra.mxu0 0.0
      %382 = vmatprep.subr.mxu0 0.0
      %383 = vmatpush1.msra.mxu0 0.0
      %384 = vmatprep.subr.mxu0 0.0
      %385 = vmatpush1.msra.mxu0 0.0
      %386 = vmatprep.subr.mxu0 0.0
      %387 = vmatpush1.msra.mxu0 0.0
      %388 = vmatprep.subr.mxu0 0.0
      %389 = vmatpush1.msra.mxu0 0.0
      %390 = vmatprep.subr.mxu0 0.0
      %391 = vmatpush1.msra.mxu0 0.0
      %392 = vmatprep.subr.mxu0 0.0
      %393 = vmatpush1.msra.mxu0 0.0
      %394 = vmatprep.subr.mxu0 0.0
      %395 = vmatpush1.msra.mxu0 0.0
      %396 = vmatprep.subr.mxu0 0.0
      %397 = vmatpush1.msra.mxu0 0.0
      %398 = vmatprep.subr.mxu0 0.0
      %399 = vmatpush1.msra.mxu0 0.0
      %400 = vmatprep.subr.mxu0 0.0
      %401 = vmatpush1.msra.mxu0 0.0
      %402 = vmatprep.mubr.f32.mxu0 0.0
      %403 = vmatmul.mubr.f32.gmra.mrb[0].mxu0 %v333
      %v404 = vpop.f32.mrb[0].mxu0
      %v405 = vadd.f32 0.0, %v404
      %v406 = vpop.f32.mrb[0].mxu0
      %407 = vdwg.mxu0
      %vm408 = vcmask 523264
      %v409 = vsel %vm408, %v327, 0.0
      %410 = vadd.xlane.f32.xlu0 %v409
      %v411 = vpop.xlane.xlu0 %410
      %v412 = vmul.f32 %v327, %v327
      %v413 = vsel %vm408, %v412, 0.0
      %414 = vadd.xlane.f32.xlu0 %v413
      %v415 = vpop.xlane.xlu0 %414
      %v416 = vsel %vm408, %v405, 0.0
      %417 = vadd.xlane.f32.xlu0 %v416
      %v418 = vpop.xlane.xlu0 %417
      %v419 = vmul.f32 %v405, %v405
      %v420 = vsel %vm408, %v419, 0.0
      %421 = vadd.xlane.f32.xlu0 %v420
      %v422 = vpop.xlane.xlu0 %421
      %v423 = vld [vmem:[%s243] sm:$0xff]
      %vm424 = vcmask 7168
      %v425 = vsel %vm424, %v411, %v415
      %vm426 = vcmask 15360
      %v427 = vsel %vm426, %v425, %v418
      %vm428 = vcmask 23552
      %v429 = vsel %vm428, %v427, %v422
      %v430 = vadd.f32 %v423, %v429
      %431 = vst.msk [vmem:[%s243] sm:$0xff] %vm252, %v430
      %p432 = scmp.lt.s32.totalorder %s19, 1
      %s433 = scalar_select %p432, %s19, 1
      %s434 = smul.addr %s433, 8
      %s435 = scalar_lea.vmem %s4, %s434
      // Predicated region
      $region41: #{downsampling_block.3} parent=35 // pred_check
        %p436 = pneg %p143
      $region42: #{downsampling_block.3} parent=35 // pred_check_branch
        %438 = sbr.rel (%p436) target = $region44
      $region43: #{downsampling_block.3} parent=35 // pred_region
        _
      $region44: #{downsampling_block.3} parent=35 // pred_fallthru
        _
    $region36: #{downsampling_block.3} parent=5 // pred_fallthru
      _
    %p439 = scmp.le.s32.totalorder 2, %s10
    // Predicated region
    $region45: #{downsampling_block.3} parent=5 // pred_check
      %p440 = pneg %p439
    $region46: #{downsampling_block.3} parent=5 // pred_check_branch
      %442 = sbr.rel (%p440) target = $region48
    $region47: #{downsampling_block.3} parent=5 // pred_region
      %s443 = ssub.s32 %s10, 2
      // Predicated region
      $region49: #{downsampling_block.3} parent=47 // pred_check
        %p444 = pneg %p149
      $region50: #{downsampling_block.3} parent=47 // pred_check_branch
        %446 = sbr.rel (%p444) target = $region52
      $region51: #{downsampling_block.3} parent=47 // pred_region
        %p447 = scmp.lt.s32.totalorder %s21, 1
        %s448 = scalar_select %p447, %s21, 1
        %s449 = smul.addr %s448, 8
        %s450 = scalar_lea.vmem %s4, %s449
      $region52: #{downsampling_block.3} parent=47 // pred_fallthru
        _
    $region48: #{downsampling_block.3} parent=5 // pred_fallthru
      _
  $region6: #{downsampling_block.3} parent=0 // loop_footer
    %s14 = sadd.s32 1, %s10
  $region7: #{downsampling_block.3} parent=0 // loop_footer_branch
    %9 = sbr.rel target = $region3
  $region8: #{downsampling_block.3} parent=0 // loop_exit
    _

</llo_original>
